<compile_context>
chip_gen: v7x
topology: tpu7x:2x2x1
jax: 0.10.0
libtpu: 0.0.40
codegen_flags: <defaults>
</compile_context>

<pallas_src>
import functools

import jax
import jax.numpy as jnp
from jax.experimental import pallas as pl
from jax.experimental.pallas import tpu as pltpu

BN_EPS = 1e-5
NORM_EPS = 1e-12
VMEM_LIMIT = 48 * 1024 * 1024      # < v7x 64 MiB physical, > default scoped limits

IN_CH = 3
IN_CH_PAD = 8                      # pad stem channels so K = 3*3*8 = 72 (mult. of 8)

ACT_DTYPE = jnp.bfloat16           # activations / patch matrices in HBM


def _vmem_specs(n):
    return [pl.BlockSpec(memory_space=pltpu.MemorySpace.VMEM) for _ in range(n)]


# ---------------------------------------------------------------------------
# Fused conv (im2col matmul) + BatchNorm(batch stats) [+ residual] [+ ReLU]
# Whole problem per call fits in VMEM, so no grid / no padding / single store.
# ---------------------------------------------------------------------------
def _conv_bn_kernel(p_ref, w_ref, g_ref, b_ref, o_ref, *, relu):
    acc = jnp.dot(p_ref[...], w_ref[...], preferred_element_type=jnp.float32)
    mean = jnp.mean(acc, axis=0, keepdims=True)
    var = jnp.mean(jnp.square(acc - mean), axis=0, keepdims=True)
    y = (acc - mean) * jax.lax.rsqrt(var + BN_EPS) * g_ref[...] + b_ref[...]
    if relu:
        y = jnp.maximum(y, 0.0)
    o_ref[...] = y.astype(o_ref.dtype)


def _conv_bn_add_relu_kernel(p_ref, w_ref, g_ref, b_ref, r_ref, o_ref):
    acc = jnp.dot(p_ref[...], w_ref[...], preferred_element_type=jnp.float32)
    mean = jnp.mean(acc, axis=0, keepdims=True)
    var = jnp.mean(jnp.square(acc - mean), axis=0, keepdims=True)
    y = (acc - mean) * jax.lax.rsqrt(var + BN_EPS) * g_ref[...] + b_ref[...]
    y = y + r_ref[...].astype(jnp.float32)
    o_ref[...] = jnp.maximum(y, 0.0).astype(o_ref.dtype)


def conv_bn_matmul(patches, w, gamma, beta, relu=True, residual=None):
    """patches: (M, K) bf16, w: (K, N) bf16 -> BN(patches @ w)[+res][ReLU], bf16."""
    M, _ = patches.shape
    N = w.shape[1]
    args = [patches, w, gamma.reshape(1, N), beta.reshape(1, N)]
    if residual is None:
        kernel = functools.partial(_conv_bn_kernel, relu=relu)
    else:
        kernel = _conv_bn_add_relu_kernel
        args.append(residual)
    return pl.pallas_call(
        kernel,
        out_shape=jax.ShapeDtypeStruct((M, N), ACT_DTYPE),
        in_specs=_vmem_specs(len(args)),
        out_specs=pl.BlockSpec(memory_space=pltpu.MemorySpace.VMEM),
        compiler_params=pltpu.CompilerParams(vmem_limit_bytes=VMEM_LIMIT),
    )(*args)


# ---------------------------------------------------------------------------
# im2col patch extraction (plain-JAX glue) + fused conv/BN wrapper
# ---------------------------------------------------------------------------
# TODO(synk): fuse 3x3 im2col into the matmul kernel (shifted in-VMEM slices)
# instead of materializing the bf16 patch matrix in HBM.
def im2col(x, kh, kw, stride, pad):
    N, H, W, C = x.shape
    xp = jnp.pad(x, ((0, 0), (pad, pad), (pad, pad), (0, 0)))
    OH = (H + 2 * pad - kh) // stride + 1
    OW = (W + 2 * pad - kw) // stride + 1
    cols = []
    for dy in range(kh):
        for dx in range(kw):
            cols.append(xp[:, dy:dy + stride * OH:stride,
                           dx:dx + stride * OW:stride, :])
    patches = jnp.concatenate(cols, axis=-1)            # (N, OH, OW, kh*kw*C) bf16
    return patches.reshape(N * OH * OW, kh * kw * C), (N, OH, OW)


def conv_bn2d(x, w, bn, kh, kw, stride, pad, relu=True, residual=None):
    """x: NHWC bf16, w: (kh*kw*Cin, Cout) bf16.  Fused conv+BN(+res)(+ReLU)."""
    if kh == 1 and kw == 1 and pad == 0:
        if stride > 1:
            x = x[:, ::stride, ::stride, :]
        N, OH, OW, C = x.shape
        patches = x.reshape(N * OH * OW, C)
    else:
        patches, (N, OH, OW) = im2col(x, kh, kw, stride, pad)
    cout = w.shape[1]
    res2d = None if residual is None else residual.reshape(N * OH * OW, cout)
    y = conv_bn_matmul(patches, w, bn["gamma"], bn["beta"],
                       relu=relu, residual=res2d)
    return y.reshape(N, OH, OW, cout)


# ---------------------------------------------------------------------------
# Single fused kernel for: feature L2-norm + all 5 projection heads
#   head = Linear(2048->512, no bias) -> BN1d -> ReLU -> Linear(512->F, bias)
#          -> L2 normalize
# grid=(5,) over stacked head parameters; feature stays resident in VMEM.
# ---------------------------------------------------------------------------
def _heads_kernel(f_ref, w1_ref, g_ref, b_ref, w2_ref, b2_ref,
                  fnorm_ref, out_ref):
    feat = f_ref[...]                                       # (B, 2048) f32

    # Feature L2-norm: same value every step, so compute/store it only once.
    @pl.when(pl.program_id(0) == 0)
    def _():
        n = jnp.sqrt(jnp.sum(feat * feat, axis=-1, keepdims=True))
        fnorm_ref[...] = feat / jnp.maximum(n, NORM_EPS)

    h = jnp.dot(feat.astype(jnp.bfloat16), w1_ref[0],
                preferred_element_type=jnp.float32)         # (B, 512)
    mean = jnp.mean(h, axis=0, keepdims=True)
    var = jnp.mean(jnp.square(h - mean), axis=0, keepdims=True)
    h = (h - mean) * jax.lax.rsqrt(var + BN_EPS) * g_ref[0] + b_ref[0]
    h = jnp.maximum(h, 0.0)
    y = jnp.dot(h.astype(jnp.bfloat16), w2_ref[0],
                preferred_element_type=jnp.float32) + b2_ref[0]
    ny = jnp.sqrt(jnp.sum(y * y, axis=-1, keepdims=True))
    out_ref[0] = y / jnp.maximum(ny, NORM_EPS)


def pallas_heads(feature, hp):
    B, D = feature.shape
    Hn, _, F = hp["w2"].shape
    fnorm, outs = pl.pallas_call(
        _heads_kernel,
        out_shape=(jax.ShapeDtypeStruct((B, D), jnp.float32),
                   jax.ShapeDtypeStruct((Hn, B, F), jnp.float32)),
        grid_spec=pltpu.PrefetchScalarGridSpec(
            num_scalar_prefetch=0,
            grid=(Hn,),
            in_specs=[
                pl.BlockSpec((B, D), lambda h: (0, 0)),
                pl.BlockSpec((1, D, 512), lambda h: (h, 0, 0)),
                pl.BlockSpec((1, 1, 512), lambda h: (h, 0, 0)),
                pl.BlockSpec((1, 1, 512), lambda h: (h, 0, 0)),
                pl.BlockSpec((1, 512, F), lambda h: (h, 0, 0)),
                pl.BlockSpec((1, 1, F), lambda h: (h, 0, 0)),
            ],
            out_specs=(
                pl.BlockSpec((B, D), lambda h: (0, 0)),
                pl.BlockSpec((1, B, F), lambda h: (h, 0, 0)),
            ),
        ),
        compiler_params=pltpu.CompilerParams(
            dimension_semantics=("arbitrary",),
            vmem_limit_bytes=VMEM_LIMIT),
    )(feature, hp["w1"], hp["gamma"], hp["beta"], hp["w2"], hp["b2"])
    return fnorm, outs


# ---------------------------------------------------------------------------
# Parameter init (He init, torchvision ResNet-50 layout [3,4,6,3] bottlenecks)
# ---------------------------------------------------------------------------
def _he(key, shape, fan_in):
    return jax.random.normal(key, shape, jnp.float32) * jnp.sqrt(2.0 / fan_in)


def init_conv(key, kh, kw, cin, cout, cin_pad=None):
    cin_pad = cin if cin_pad is None else cin_pad
    w = _he(key, (kh, kw, cin, cout), kh * kw * cin)
    if cin_pad != cin:
        w = jnp.pad(w, ((0, 0), (0, 0), (0, cin_pad - cin), (0, 0)))
    return w.reshape(kh * kw * cin_pad, cout).astype(jnp.bfloat16)


def init_bn(c):
    return {"gamma": jnp.ones((c,), jnp.float32),
            "beta": jnp.zeros((c,), jnp.float32)}


def init_bottleneck(key, cin, width, stride):
    ks = jax.random.split(key, 4)
    p = {
        "conv1": init_conv(ks[0], 1, 1, cin, width), "bn1": init_bn(width),
        "conv2": init_conv(ks[1], 3, 3, width, width), "bn2": init_bn(width),
        "conv3": init_conv(ks[2], 1, 1, width, width * 4),
        "bn3": init_bn(width * 4),
        "stride": stride,
    }
    if stride != 1 or cin != width * 4:
        p["down_conv"] = init_conv(ks[3], 1, 1, cin, width * 4)
        p["down_bn"] = init_bn(width * 4)
    return p


def init_resnet50(key):
    layers_cfg = [(64, 3, 1), (128, 4, 2), (256, 6, 2), (512, 3, 2)]
    k_stem, k_layers = jax.random.split(key)
    params = {"conv1": init_conv(k_stem, 3, 3, IN_CH, 64, cin_pad=IN_CH_PAD),
              "bn1": init_bn(64),
              "layers": []}
    cin = 64
    lkey = k_layers
    for width, blocks, stride in layers_cfg:
        layer = []
        for i in range(blocks):
            lkey, bk = jax.random.split(lkey)
            layer.append(init_bottleneck(bk, cin, width,
                                         stride if i == 0 else 1))
            cin = width * 4
        params["layers"].append(layer)
    return params


def init_heads(key, feature_dim, n_heads=5):
    ks = jax.random.split(key, n_heads)
    w1, w2, b2 = [], [], []
    for k in ks:
        k1, k2, k3 = jax.random.split(k, 3)
        w1.append(_he(k1, (2048, 512), 2048).astype(jnp.bfloat16))
        w2.append(_he(k2, (512, feature_dim), 512).astype(jnp.bfloat16))
        b2.append(jax.random.normal(k3, (feature_dim,), jnp.float32) * 0.01)
    return {
        "w1": jnp.stack(w1),                                  # (5, 2048, 512) bf16
        "gamma": jnp.ones((n_heads, 1, 512), jnp.float32),
        "beta": jnp.zeros((n_heads, 1, 512), jnp.float32),
        "w2": jnp.stack(w2),                                  # (5, 512, F) bf16
        "b2": jnp.stack(b2)[:, None, :],                      # (5, 1, F) f32
    }


# ---------------------------------------------------------------------------
# Forward pass
# ---------------------------------------------------------------------------
def bottleneck(x, p):
    if "down_conv" in p:
        identity = conv_bn2d(x, p["down_conv"], p["down_bn"], 1, 1,
                             p["stride"], 0, relu=False)
    else:
        identity = x
    out = conv_bn2d(x, p["conv1"], p["bn1"], 1, 1, 1, 0, relu=True)
    out = conv_bn2d(out, p["conv2"], p["bn2"], 3, 3, p["stride"], 1, relu=True)
    # conv3 + BN3 + residual add + ReLU fused in one kernel
    out = conv_bn2d(out, p["conv3"], p["bn3"], 1, 1, 1, 0, residual=identity)
    return out


def model_forward(params, x_nchw):
    x = jnp.transpose(x_nchw, (0, 2, 3, 1))                        # NCHW -> NHWC
    x = jnp.pad(x, ((0, 0), (0, 0), (0, 0), (0, IN_CH_PAD - IN_CH)))
    x = x.astype(ACT_DTYPE)
    x = conv_bn2d(x, params["conv1"], params["bn1"], 3, 3, 1, 1, relu=True)
    for layer in params["layers"]:
        for block in layer:
            x = bottleneck(x, block)
    # AdaptiveAvgPool2d(1) + flatten -> (B, 2048)   (tiny reduction, plain JAX)
    feature = jnp.mean(x.astype(jnp.float32), axis=(1, 2))
    fnorm, outs = pallas_heads(feature, params["heads"])
    return (fnorm,) + tuple(outs[i] for i in range(outs.shape[0]))


if __name__ == "__main__":
    key = jax.random.PRNGKey(0)
    k_backbone, k_heads, k_x = jax.random.split(key, 3)

    feature_dim = 128
    params = init_resnet50(k_backbone)
    params["heads"] = init_heads(k_heads, feature_dim)

    # small input, NCHW like the PyTorch module
    x = jax.random.normal(k_x, (2, 3, 16, 16), jnp.float32)

    outs = model_forward(params, x)
    outs = jax.block_until_ready(outs)

    assert len(outs) == 6
    assert outs[0].shape == (2, 2048)
    assert all(o.shape == (2, feature_dim) for o in outs[1:])
    assert all(bool(jnp.all(jnp.isfinite(o))) for o in outs)
    print("KERNEL_OK")
</pallas_src>

<mosaic_0001>
module attributes {stable_mosaic.version = 11 : i64} {
  func.func @_conv_bn_kernel(%arg0: memref<512x72xbf16, #tpu.memory_space<vmem>>, %arg1: memref<72x64xbf16, #tpu.memory_space<vmem>>, %arg2: memref<1x64xf32, #tpu.memory_space<vmem>>, %arg3: memref<1x64xf32, #tpu.memory_space<vmem>>, %arg4: memref<512x64xbf16, #tpu.memory_space<vmem>>) attributes {dimension_semantics = [], scalar_prefetch = 0 : i64, scratch_operands = 0 : i64, tpu.core_type = #tpu.core_type<tc>} {
    %c0 = arith.constant 0 : index
    %c0_0 = arith.constant 0 : index
    %0 = vector.load %arg0[%c0, %c0_0] : memref<512x72xbf16, #tpu.memory_space<vmem>>, vector<512x72xbf16>
    %c0_1 = arith.constant 0 : index
    %c0_2 = arith.constant 0 : index
    %1 = vector.load %arg1[%c0_1, %c0_2] : memref<72x64xbf16, #tpu.memory_space<vmem>>, vector<72x64xbf16>
    %cst = arith.constant dense<0.000000e+00> : vector<512x64xf32>
    %2 = tpu.matmul %0, %1, %cst {dimension_numbers = #tpu.dot_dimension_numbers<[1], [0], [0], [1], [0, 0, 1, 1], [], []>} : vector<512x72xbf16>, vector<72x64xbf16>, vector<512x64xf32> -> vector<512x64xf32>
    %cst_3 = arith.constant dense<0.000000e+00> : vector<64xf32>
    %3 = vector.multi_reduction <add>, %2, %cst_3 [0] : vector<512x64xf32> to vector<64xf32>
    %4 = vector.shape_cast %3 : vector<64xf32> to vector<1x64xf32>
    %cst_4 = arith.constant 5.120000e+02 : f32
    %5 = vector.broadcast %cst_4 : f32 to vector<1x64xf32>
    %6 = arith.divf %4, %5 : vector<1x64xf32>
    %7 = vector.broadcast %6 : vector<1x64xf32> to vector<512x64xf32>
    %8 = arith.subf %2, %7 : vector<512x64xf32>
    %9 = arith.mulf %8, %8 : vector<512x64xf32>
    %cst_5 = arith.constant dense<0.000000e+00> : vector<64xf32>
    %10 = vector.multi_reduction <add>, %9, %cst_5 [0] : vector<512x64xf32> to vector<64xf32>
    %11 = vector.shape_cast %10 : vector<64xf32> to vector<1x64xf32>
    %cst_6 = arith.constant 5.120000e+02 : f32
    %12 = vector.broadcast %cst_6 : f32 to vector<1x64xf32>
    %13 = arith.divf %11, %12 : vector<1x64xf32>
    %14 = vector.broadcast %6 : vector<1x64xf32> to vector<512x64xf32>
    %15 = arith.subf %2, %14 : vector<512x64xf32>
    %cst_7 = arith.constant 9.99999974E-6 : f32
    %16 = vector.broadcast %cst_7 : f32 to vector<1x64xf32>
    %17 = arith.addf %13, %16 : vector<1x64xf32>
    %18 = math.rsqrt %17 : vector<1x64xf32>
    %19 = vector.broadcast %18 : vector<1x64xf32> to vector<512x64xf32>
    %20 = arith.mulf %15, %19 : vector<512x64xf32>
    %c0_8 = arith.constant 0 : index
    %c0_9 = arith.constant 0 : index
    %21 = vector.load %arg2[%c0_8, %c0_9] : memref<1x64xf32, #tpu.memory_space<vmem>>, vector<1x64xf32>
    %22 = vector.broadcast %21 : vector<1x64xf32> to vector<512x64xf32>
    %23 = arith.mulf %20, %22 : vector<512x64xf32>
    %c0_10 = arith.constant 0 : index
    %c0_11 = arith.constant 0 : index
    %24 = vector.load %arg3[%c0_10, %c0_11] : memref<1x64xf32, #tpu.memory_space<vmem>>, vector<1x64xf32>
    %25 = vector.broadcast %24 : vector<1x64xf32> to vector<512x64xf32>
    %26 = arith.addf %23, %25 : vector<512x64xf32>
    %cst_12 = arith.constant 0.000000e+00 : f32
    %27 = vector.broadcast %cst_12 : f32 to vector<512x64xf32>
    %28 = arith.maximumf %26, %27 : vector<512x64xf32>
    %29 = arith.truncf %28 : vector<512x64xf32> to vector<512x64xbf16>
    %c0_13 = arith.constant 0 : index
    %c0_14 = arith.constant 0 : index
    %30 = vector.load %arg4[%c0_13, %c0_14] : memref<512x64xbf16, #tpu.memory_space<vmem>>, vector<512x64xbf16>
    tpu.vector_store %arg4[%c0_13, %c0_14], %29 {strides = array<i32>} : memref<512x64xbf16, #tpu.memory_space<vmem>>, vector<512x64xbf16>,
    return
  }
}

</mosaic_0001>

<llo_original>
// kernel: tpu_custom_call.1
$region0: #{tpu_custom_call.1}
  #allocation0 [shape = 'u32[]', space=smem, size = 0x4, offset = 0x4, fixed_abs, tag = 'smem constant byte address 0x4 - core index']
  #allocation1 [shape = 'u32[144,128]{1,0:T(1,128)}', space=vmem, size = 0x12000, scoped, tag = 'internal scratch']
  %s0 = inlined_call_operand.vmem [shape: bf16[512,72], index: 0, kind: input, shape index: {}]
  %s1 = inlined_call_operand.vmem [shape: bf16[72,64], index: 1, kind: input, shape index: {}]
  %s2 = inlined_call_operand.vmem [shape: f32[1,64], index: 2, kind: input, shape index: {}]
  %s3 = inlined_call_operand.vmem [shape: f32[1,64], index: 3, kind: input, shape index: {}]
  %s4 = inlined_call_operand.vmem [shape: bf16[512,64], index: 4, kind: output, shape index: {}]
  %s5 = sld [smem:[#allocation0]]
  $region26: #{tpu_custom_call.1} parent=0
    _
  %s7 = ssub.s32 1, %s5
  %s8 = scalar_select 0, %s7, %s5
  // Predicated region
  $region2: #{tpu_custom_call.1} parent=0 // pred_check
    _
  $region3: #{tpu_custom_call.1} parent=0 // pred_check_branch
    %10 = sbr.rel (0) target = $region5
  $region4: #{tpu_custom_call.1} parent=0 // pred_region
    _
  $region5: #{tpu_custom_call.1} parent=0 // pred_fallthru
    _
  // Predicated region
  $region6: #{tpu_custom_call.1} parent=0 // pred_check
    _
  $region7: #{tpu_custom_call.1} parent=0 // pred_check_branch
    %12 = sbr.rel (0) target = $region9
  $region8: #{tpu_custom_call.1} parent=0 // pred_region
    _
  $region9: #{tpu_custom_call.1} parent=0 // pred_fallthru
    _
  // Predicated region
  $region10: #{tpu_custom_call.1} parent=0 // pred_check
    _
  $region11: #{tpu_custom_call.1} parent=0 // pred_check_branch
    %14 = sbr.rel (0) target = $region13
  $region12: #{tpu_custom_call.1} parent=0 // pred_region
    _
  $region13: #{tpu_custom_call.1} parent=0 // pred_fallthru
    _
  // Predicated region
  $region14: #{tpu_custom_call.1} parent=0 // pred_check
    _
  $region15: #{tpu_custom_call.1} parent=0 // pred_check_branch
    %16 = sbr.rel (0) target = $region17
  $region16: #{tpu_custom_call.1} parent=0 // pred_region
    _
  $region17: #{tpu_custom_call.1} parent=0 // pred_fallthru
    _
  %v18 = vld [vmem:[%s0] sm:$0xf]
  %v19 = vld [vmem:[%s0 + $0x4] sm:$0xf]
  %v20 = vld [vmem:[%s0 + $0x8] sm:$0xf]
  %v21 = vld [vmem:[%s0 + $0xc] sm:$0xf]
  %v22 = vld [vmem:[%s0 + $0x10] sm:$0xf]
  %v23 = vld [vmem:[%s0 + $0x14] sm:$0xf]
  %v24 = vld [vmem:[%s0 + $0x18] sm:$0xf]
  %v25 = vld [vmem:[%s0 + $0x1c] sm:$0xf]
  %v26 = vld [vmem:[%s0 + $0x20] sm:$0xf]
  %v27 = vld [vmem:[%s0 + $0x24] sm:$0xf]
  %v28 = vld [vmem:[%s0 + $0x28] sm:$0xf]
  %v29 = vld [vmem:[%s0 + $0x2c] sm:$0xf]
  %v30 = vld [vmem:[%s0 + $0x30] sm:$0xf]
  %v31 = vld [vmem:[%s0 + $0x34] sm:$0xf]
  %v32 = vld [vmem:[%s0 + $0x38] sm:$0xf]
  %v33 = vld [vmem:[%s0 + $0x3c] sm:$0xf]
  %v34 = vld [vmem:[%s0 + $0x40] sm:$0xf]
  %v35 = vld [vmem:[%s0 + $0x44] sm:$0xf]
  %v36 = vld [vmem:[%s0 + $0x48] sm:$0xf]
  %v37 = vld [vmem:[%s0 + $0x4c] sm:$0xf]
  %v38 = vld [vmem:[%s0 + $0x50] sm:$0xf]
  %v39 = vld [vmem:[%s0 + $0x54] sm:$0xf]
  %v40 = vld [vmem:[%s0 + $0x58] sm:$0xf]
  %v41 = vld [vmem:[%s0 + $0x5c] sm:$0xf]
  %v42 = vld [vmem:[%s0 + $0x60] sm:$0xf]
  %v43 = vld [vmem:[%s0 + $0x64] sm:$0xf]
  %v44 = vld [vmem:[%s0 + $0x68] sm:$0xf]
  %v45 = vld [vmem:[%s0 + $0x6c] sm:$0xf]
  %v46 = vld [vmem:[%s0 + $0x70] sm:$0xf]
  %v47 = vld [vmem:[%s0 + $0x74] sm:$0xf]
  %v48 = vld [vmem:[%s0 + $0x78] sm:$0xf]
  %v49 = vld [vmem:[%s0 + $0x7c] sm:$0xf]
  %v50 = vld [vmem:[%s0 + $0x80] sm:$0xf]
  %v51 = vld [vmem:[%s0 + $0x84] sm:$0xf]
  %v52 = vld [vmem:[%s0 + $0x88] sm:$0xf]
  %v53 = vld [vmem:[%s0 + $0x8c] sm:$0xf]
  %v54 = vld [vmem:[%s0 + $0x90] sm:$0xf]
  %v55 = vld [vmem:[%s0 + $0x94] sm:$0xf]
  %v56 = vld [vmem:[%s0 + $0x98] sm:$0xf]
  %v57 = vld [vmem:[%s0 + $0x9c] sm:$0xf]
  %v58 = vld [vmem:[%s0 + $0xa0] sm:$0xf]
  %v59 = vld [vmem:[%s0 + $0xa4] sm:$0xf]
  %v60 = vld [vmem:[%s0 + $0xa8] sm:$0xf]
  %v61 = vld [vmem:[%s0 + $0xac] sm:$0xf]
  %v62 = vld [vmem:[%s0 + $0xb0] sm:$0xf]
  %v63 = vld [vmem:[%s0 + $0xb4] sm:$0xf]
  %v64 = vld [vmem:[%s0 + $0xb8] sm:$0xf]
  %v65 = vld [vmem:[%s0 + $0xbc] sm:$0xf]
  %v66 = vld [vmem:[%s0 + $0xc0] sm:$0xf]
  %v67 = vld [vmem:[%s0 + $0xc4] sm:$0xf]
  %v68 = vld [vmem:[%s0 + $0xc8] sm:$0xf]
  %v69 = vld [vmem:[%s0 + $0xcc] sm:$0xf]
  %v70 = vld [vmem:[%s0 + $0xd0] sm:$0xf]
  %v71 = vld [vmem:[%s0 + $0xd4] sm:$0xf]
  %v72 = vld [vmem:[%s0 + $0xd8] sm:$0xf]
  %v73 = vld [vmem:[%s0 + $0xdc] sm:$0xf]
  %v74 = vld [vmem:[%s0 + $0xe0] sm:$0xf]
  %v75 = vld [vmem:[%s0 + $0xe4] sm:$0xf]
  %v76 = vld [vmem:[%s0 + $0xe8] sm:$0xf]
  %v77 = vld [vmem:[%s0 + $0xec] sm:$0xf]
  %v78 = vld [vmem:[%s0 + $0xf0] sm:$0xf]
  %v79 = vld [vmem:[%s0 + $0xf4] sm:$0xf]
  %v80 = vld [vmem:[%s0 + $0xf8] sm:$0xf]
  %v81 = vld [vmem:[%s0 + $0xfc] sm:$0xf]
  %v82 = vld [vmem:[%s1] sm:$0xf]
  %v83 = vld [vmem:[%s1 + $0x4] sm:$0xf]
  %v84 = vld [vmem:[%s1 + $0x8] sm:$0xf]
  %v85 = vld [vmem:[%s1 + $0xc] sm:$0xf]
  %v86 = vld [vmem:[%s1 + $0x10] sm:$0xf]
  %v87 = vld [vmem:[%s1 + $0x14] sm:$0xf]
  %v88 = vld [vmem:[%s1 + $0x18] sm:$0xf]
  %v89 = vld [vmem:[%s1 + $0x1c] sm:$0xf]
  %v90 = vld [vmem:[%s1 + $0x20] sm:$0xf]
  %v155 = vunpack.c.l.b16 %v18
  %v156 = vunpack.c.l.b16 %v19
  %v157 = vunpack.c.l.b16 %v20
  %v158 = vunpack.c.l.b16 %v21
  %v159 = vunpack.c.l.b16 %v22
  %v160 = vunpack.c.l.b16 %v23
  %v161 = vunpack.c.l.b16 %v24
  %v162 = vunpack.c.l.b16 %v25
  %v163 = vunpack.c.l.b16 %v26
  %v164 = vunpack.c.l.b16 %v27
  %v165 = vunpack.c.l.b16 %v28
  %v166 = vunpack.c.l.b16 %v29
  %v167 = vunpack.c.l.b16 %v30
  %v168 = vunpack.c.l.b16 %v31
  %v169 = vunpack.c.l.b16 %v32
  %v170 = vunpack.c.l.b16 %v33
  %v171 = vunpack.c.l.b16 %v34
  %v172 = vunpack.c.l.b16 %v35
  %v173 = vunpack.c.l.b16 %v36
  %v174 = vunpack.c.l.b16 %v37
  %v175 = vunpack.c.l.b16 %v38
  %v176 = vunpack.c.l.b16 %v39
  %v177 = vunpack.c.l.b16 %v40
  %v178 = vunpack.c.l.b16 %v41
  %v179 = vunpack.c.l.b16 %v42
  %v180 = vunpack.c.l.b16 %v43
  %v181 = vunpack.c.l.b16 %v44
  %v182 = vunpack.c.l.b16 %v45
  %v183 = vunpack.c.l.b16 %v46
  %v184 = vunpack.c.l.b16 %v47
  %v185 = vunpack.c.l.b16 %v48
  %v186 = vunpack.c.l.b16 %v49
  %v187 = vunpack.c.l.b16 %v50
  %v188 = vunpack.c.l.b16 %v51
  %v189 = vunpack.c.l.b16 %v52
  %v190 = vunpack.c.l.b16 %v53
  %v191 = vunpack.c.l.b16 %v54
  %v192 = vunpack.c.l.b16 %v55
  %v193 = vunpack.c.l.b16 %v56
  %v194 = vunpack.c.l.b16 %v57
  %v195 = vunpack.c.l.b16 %v58
  %v196 = vunpack.c.l.b16 %v59
  %v197 = vunpack.c.l.b16 %v60
  %v198 = vunpack.c.l.b16 %v61
  %v199 = vunpack.c.l.b16 %v62
  %v200 = vunpack.c.l.b16 %v63
  %v201 = vunpack.c.l.b16 %v64
  %v202 = vunpack.c.l.b16 %v65
  %v203 = vunpack.c.l.b16 %v66
  %v204 = vunpack.c.l.b16 %v67
  %v205 = vunpack.c.l.b16 %v68
  %v206 = vunpack.c.l.b16 %v69
  %v207 = vunpack.c.l.b16 %v70
  %v208 = vunpack.c.l.b16 %v71
  %v209 = vunpack.c.l.b16 %v72
  %v210 = vunpack.c.l.b16 %v73
  %v211 = vunpack.c.l.b16 %v74
  %v212 = vunpack.c.l.b16 %v75
  %v213 = vunpack.c.l.b16 %v76
  %v214 = vunpack.c.l.b16 %v77
  %v215 = vunpack.c.l.b16 %v78
  %v216 = vunpack.c.l.b16 %v79
  %v217 = vunpack.c.l.b16 %v80
  %v218 = vunpack.c.l.b16 %v81
  %v219 = vpack.c.b16 %v156, %v155
  %v220 = vpack.c.b16 %v158, %v157
  %v221 = vpack.c.b16 %v160, %v159
  %v222 = vpack.c.b16 %v162, %v161
  %v223 = vpack.c.b16 %v164, %v163
  %v224 = vpack.c.b16 %v166, %v165
  %v225 = vpack.c.b16 %v168, %v167
  %v226 = vpack.c.b16 %v170, %v169
  %v227 = vpack.c.b16 %v172, %v171
  %v228 = vpack.c.b16 %v174, %v173
  %v229 = vpack.c.b16 %v176, %v175
  %v230 = vpack.c.b16 %v178, %v177
  %v231 = vpack.c.b16 %v180, %v179
  %v232 = vpack.c.b16 %v182, %v181
  %v233 = vpack.c.b16 %v184, %v183
  %v234 = vpack.c.b16 %v186, %v185
  %v235 = vpack.c.b16 %v188, %v187
  %v236 = vpack.c.b16 %v190, %v189
  %v237 = vpack.c.b16 %v192, %v191
  %v238 = vpack.c.b16 %v194, %v193
  %v239 = vpack.c.b16 %v196, %v195
  %v240 = vpack.c.b16 %v198, %v197
  %v241 = vpack.c.b16 %v200, %v199
  %v242 = vpack.c.b16 %v202, %v201
  %v243 = vpack.c.b16 %v204, %v203
  %v244 = vpack.c.b16 %v206, %v205
  %v245 = vpack.c.b16 %v208, %v207
  %v246 = vpack.c.b16 %v210, %v209
  %v247 = vpack.c.b16 %v212, %v211
  %v248 = vpack.c.b16 %v214, %v213
  %v249 = vpack.c.b16 %v216, %v215
  %v250 = vpack.c.b16 %v218, %v217
  %v260 = vunpack.c.l.b16 %v82
  %v261 = vunpack.c.l.b16 %v83
  %v262 = vunpack.c.l.b16 %v84
  %v263 = vunpack.c.l.b16 %v85
  %v264 = vunpack.c.l.b16 %v86
  %v265 = vunpack.c.l.b16 %v87
  %v266 = vunpack.c.l.b16 %v88
  %v267 = vunpack.c.l.b16 %v89
  %v268 = vunpack.c.l.b16 %v90
  %v269 = vpack.c.b16 %v261, %v260
  %v270 = vpack.c.b16 %v263, %v262
  %v271 = vpack.c.b16 %v265, %v264
  %v272 = vpack.c.b16 %v267, %v266
  %v273 = vpack.c.b16 %v268, %v268
  %vm278 = vcmask 588800
  %v280 = vsel %vm278, %v219, 0
  %v283 = vsel %vm278, %v220, 0
  %v286 = vsel %vm278, %v221, 0
  %v289 = vsel %vm278, %v222, 0
  %v292 = vsel %vm278, %v223, 0
  %v295 = vsel %vm278, %v224, 0
  %v298 = vsel %vm278, %v225, 0
  %v301 = vsel %vm278, %v226, 0
  %v304 = vsel %vm278, %v227, 0
  %v307 = vsel %vm278, %v228, 0
  %v310 = vsel %vm278, %v229, 0
  %v313 = vsel %vm278, %v230, 0
  %v316 = vsel %vm278, %v231, 0
  %v319 = vsel %vm278, %v232, 0
  %v322 = vsel %vm278, %v233, 0
  %v325 = vsel %vm278, %v234, 0
  %v328 = vsel %vm278, %v235, 0
  %v331 = vsel %vm278, %v236, 0
  %v334 = vsel %vm278, %v237, 0
  %v337 = vsel %vm278, %v238, 0
  %v340 = vsel %vm278, %v239, 0
  %v343 = vsel %vm278, %v240, 0
  %v346 = vsel %vm278, %v241, 0
  %v349 = vsel %vm278, %v242, 0
  %v352 = vsel %vm278, %v243, 0
  %v355 = vsel %vm278, %v244, 0
  %v358 = vsel %vm278, %v245, 0
  %v361 = vsel %vm278, %v246, 0
  %v364 = vsel %vm278, %v247, 0
  %v367 = vsel %vm278, %v248, 0
  %v370 = vsel %vm278, %v249, 0
  %v373 = vsel %vm278, %v250, 0
  %vm375 = vcmask 1043456
  %v377 = vsel %vm375, %v273, 0
  %379 = vmatprep.subr.bf16.mxu0 0
  %380 = vmatpush1.bf16.msra.mxu0 %v269
  %381 = vmatprep.subr.bf16.mxu0 0
  %382 = vmatpush1.bf16.msra.mxu0 %v270
  %383 = vmatprep.subr.bf16.mxu0 0
  %384 = vmatpush1.bf16.msra.mxu0 %v271
  %385 = vmatprep.subr.bf16.mxu0 0
  %386 = vmatpush1.bf16.msra.mxu0 %v272
  %387 = vmatprep.subr.bf16.mxu0 0
  %388 = vmatpush1.bf16.msra.mxu0 %v377
  %389 = vmatprep.subr.bf16.mxu0 0
  %390 = vmatpush1.bf16.msra.mxu0 0
  %391 = vmatprep.subr.bf16.mxu0 0
  %392 = vmatpush1.bf16.msra.mxu0 0
  %393 = vmatprep.subr.bf16.mxu0 0
  %394 = vmatpush1.bf16.msra.mxu0 0
  %395 = vmatprep.subr.bf16.mxu0 0
  %396 = vmatpush1.bf16.msra.mxu0 0
  %397 = vmatprep.subr.bf16.mxu0 0
  %398 = vmatpush1.bf16.msra.mxu0 0
  %399 = vmatprep.subr.bf16.mxu0 0
  %400 = vmatpush1.bf16.msra.mxu0 0
  %401 = vmatprep.subr.bf16.mxu0 0
  %402 = vmatpush1.bf16.msra.mxu0 0
  %403 = vmatprep.subr.bf16.mxu0 0
  %404 = vmatpush1.bf16.msra.mxu0 0
  %405 = vmatprep.subr.bf16.mxu0 0
  %406 = vmatpush1.bf16.msra.mxu0 0
  %407 = vmatprep.subr.bf16.mxu0 0
  %408 = vmatpush1.bf16.msra.mxu0 0
  %409 = vmatprep.subr.bf16.mxu0 0
  %410 = vmatpush1.bf16.msra.mxu0 0
  %411 = vmatprep.mubr.bf16.mxu0 0
  %412 = vmatmul.mubr.bf16.gmra.mrb[0].mxu0 %v280
  %v413 = vpop.f32.mrb[0].mxu0
  %v414 = vadd.f32 0.0, %v413
  %v415 = vpop.f32.mrb[0].mxu0
  %v416 = vpop.f32.mrb[0].mxu0
  %v417 = vadd.f32 0.0, %v416
  %v418 = vpop.f32.mrb[0].mxu0
  %419 = vmatprep.mubr.bf16.mxu0 0
  %420 = vmatmul.mubr.bf16.gmra.mrb[0].mxu0 %v283
  %v421 = vpop.f32.mrb[0].mxu0
  %v422 = vadd.f32 0.0, %v421
  %v423 = vpop.f32.mrb[0].mxu0
  %v424 = vpop.f32.mrb[0].mxu0
  %v425 = vadd.f32 0.0, %v424
  %v426 = vpop.f32.mrb[0].mxu0
  %427 = vmatprep.mubr.bf16.mxu0 0
  %428 = vmatmul.mubr.bf16.gmra.mrb[0].mxu0 %v286
  %v429 = vpop.f32.mrb[0].mxu0
  %v430 = vadd.f32 0.0, %v429
  %v431 = vpop.f32.mrb[0].mxu0
  %v432 = vpop.f32.mrb[0].mxu0
  %v433 = vadd.f32 0.0, %v432
  %v434 = vpop.f32.mrb[0].mxu0
  %435 = vmatprep.mubr.bf16.mxu0 0
  %436 = vmatmul.mubr.bf16.gmra.mrb[0].mxu0 %v289
  %v437 = vpop.f32.mrb[0].mxu0
  %v438 = vadd.f32 0.0, %v437
  %v439 = vpop.f32.mrb[0].mxu0
  %v440 = vpop.f32.mrb[0].mxu0
  %v441 = vadd.f32 0.0, %v440
  %v442 = vpop.f32.mrb[0].mxu0
  %443 = vmatprep.mubr.bf16.mxu0 0
  %444 = vmatmul.mubr.bf16.gmra.mrb[0].mxu0 %v292
  %v445 = vpop.f32.mrb[0].mxu0
  %v446 = vadd.f32 0.0, %v445
  %v447 = vpop.f32.mrb[0].mxu0
  %v448 = vpop.f32.mrb[0].mxu0
  %v449 = vadd.f32 0.0, %v448
  %v450 = vpop.f32.mrb[0].mxu0
  %451 = vmatprep.mubr.bf16.mxu0 0
  %452 = vmatmul.mubr.bf16.gmra.mrb[0].mxu0 %v295
  %v453 = vpop.f32.mrb[0].mxu0
  %v454 = vadd.f32 0.0, %v453
  %v455 = vpop.f32.mrb[0].mxu0
  %v456 = vpop.f32.mrb[0].mxu0
  %v457 = vadd.f32 0.0, %v456
  %v458 = vpop.f32.mrb[0].mxu0
  %459 = vmatprep.mubr.bf16.mxu0 0
  %460 = vmatmul.mubr.bf16.gmra.mrb[0].mxu0 %v298
  %v461 = vpop.f32.mrb[0].mxu0
  %v462 = vadd.f32 0.0, %v461
  %v463 = vpop.f32.mrb[0].mxu0
  %v464 = vpop.f32.mrb[0].mxu0
  %v465 = vadd.f32 0.0, %v464
  %v466 = vpop.f32.mrb[0].mxu0
  %467 = vmatprep.mubr.bf16.mxu0 0
  %468 = vmatmul.mubr.bf16.gmra.mrb[0].mxu0 %v301
  %v469 = vpop.f32.mrb[0].mxu0
  %v470 = vadd.f32 0.0, %v469
  %v471 = vpop.f32.mrb[0].mxu0
  %v472 = vpop.f32.mrb[0].mxu0
  %v473 = vadd.f32 0.0, %v472
  %v474 = vpop.f32.mrb[0].mxu0
  %475 = vmatprep.mubr.bf16.mxu0 0
  %476 = vmatmul.mubr.bf16.gmra.mrb[0].mxu0 %v304
  %v477 = vpop.f32.mrb[0].mxu0
  %v478 = vadd.f32 0.0, %v477
  %v479 = vpop.f32.mrb[0].mxu0
  %v480 = vpop.f32.mrb[0].mxu0
  %v481 = vadd.f32 0.0, %v480
  %v482 = vpop.f32.mrb[0].mxu0
  %483 = vmatprep.mubr.bf16.mxu0 0
  %484 = vmatmul.mubr.bf16.gmra.mrb[0].mxu0 %v307
  %v485 = vpop.f32.mrb[0].mxu0
  %v486 = vadd.f32 0.0, %v485
  %v487 = vpop.f32.mrb[0].mxu0
  %v488 = vpop.f32.mrb[0].mxu0
  %v489 = vadd.f32 0.0, %v488
  %v490 = vpop.f32.mrb[0].mxu0
  %491 = vmatprep.mubr.bf16.mxu0 0
  %492 = vmatmul.mubr.bf16.gmra.mrb[0].mxu0 %v310
  %v493 = vpop.f32.mrb[0].mxu0
  %v494 = vadd.f32 0.0, %v493
  %v495 = vpop.f32.mrb[0].mxu0
  %v496 = vpop.f32.mrb[0].mxu0
  %v497 = vadd.f32 0.0, %v496
  %v498 = vpop.f32.mrb[0].mxu0
  %499 = vmatprep.mubr.bf16.mxu0 0
  %500 = vmatmul.mubr.bf16.gmra.mrb[0].mxu0 %v313
  %v501 = vpop.f32.mrb[0].mxu0
  %v502 = vadd.f32 0.0, %v501
  %v503 = vpop.f32.mrb[0].mxu0
  %v504 = vpop.f32.mrb[0].mxu0
  %v505 = vadd.f32 0.0, %v504
  %v506 = vpop.f32.mrb[0].mxu0
  %507 = vmatprep.mubr.bf16.mxu0 0
  %508 = vmatmul.mubr.bf16.gmra.mrb[0].mxu0 %v316
  %v509 = vpop.f32.mrb[0].mxu0
  %v510 = vadd.f32 0.0, %v509
  %v511 = vpop.f32.mrb[0].mxu0
  %v512 = vpop.f32.mrb[0].mxu0
  %v513 = vadd.f32 0.0, %v512
  %v514 = vpop.f32.mrb[0].mxu0
  %515 = vmatprep.mubr.bf16.mxu0 0
  %516 = vmatmul.mubr.bf16.gmra.mrb[0].mxu0 %v319
  %v517 = vpop.f32.mrb[0].mxu0
  %v518 = vadd.f32 0.0, %v517
  %v519 = vpop.f32.mrb[0].mxu0
  %v520 = vpop.f32.mrb[0].mxu0
  %v521 = vadd.f32 0.0, %v520
  %v522 = vpop.f32.mrb[0].mxu0
  %523 = vmatprep.mubr.bf16.mxu0 0
  %524 = vmatmul.mubr.bf16.gmra.mrb[0].mxu0 %v322
  %v525 = vpop.f32.mrb[0].mxu0
  %v526 = vadd.f32 0.0, %v525
  %v527 = vpop.f32.mrb[0].mxu0
  %v528 = vpop.f32.mrb[0].mxu0
  %v529 = vadd.f32 0.0, %v528
  %v530 = vpop.f32.mrb[0].mxu0
  %531 = vmatprep.mubr.bf16.mxu0 0
  %532 = vmatmul.mubr.bf16.gmra.mrb[0].mxu0 %v325
  %v533 = vpop.f32.mrb[0].mxu0
  %v534 = vadd.f32 0.0, %v533
  %v535 = vpop.f32.mrb[0].mxu0
  %v536 = vpop.f32.mrb[0].mxu0
  %v537 = vadd.f32 0.0, %v536
  %v538 = vpop.f32.mrb[0].mxu0
  %539 = vmatprep.mubr.bf16.mxu0 0
  %540 = vmatmul.mubr.bf16.gmra.mrb[0].mxu0 %v328
  %v541 = vpop.f32.mrb[0].mxu0
  %v542 = vadd.f32 0.0, %v541
  %v543 = vpop.f32.mrb[0].mxu0
  %v544 = vpop.f32.mrb[0].mxu0
  %v545 = vadd.f32 0.0, %v544
  %v546 = vpop.f32.mrb[0].mxu0
  %547 = vmatprep.mubr.bf16.mxu0 0
  %548 = vmatmul.mubr.bf16.gmra.mrb[0].mxu0 %v331
  %v549 = vpop.f32.mrb[0].mxu0
  %v550 = vadd.f32 0.0, %v549
  %v551 = vpop.f32.mrb[0].mxu0
  %v552 = vpop.f32.mrb[0].mxu0
  %v553 = vadd.f32 0.0, %v552
  %v554 = vpop.f32.mrb[0].mxu0
  %555 = vmatprep.mubr.bf16.mxu0 0
  %556 = vmatmul.mubr.bf16.gmra.mrb[0].mxu0 %v334
  %v557 = vpop.f32.mrb[0].mxu0
  %v558 = vadd.f32 0.0, %v557
  %v559 = vpop.f32.mrb[0].mxu0
  %v560 = vpop.f32.mrb[0].mxu0
  %v561 = vadd.f32 0.0, %v560
  %v562 = vpop.f32.mrb[0].mxu0
  %563 = vmatprep.mubr.bf16.mxu0 0
  %564 = vmatmul.mubr.bf16.gmra.mrb[0].mxu0 %v337
  %v565 = vpop.f32.mrb[0].mxu0
  %v566 = vadd.f32 0.0, %v565
  %v567 = vpop.f32.mrb[0].mxu0
  %v568 = vpop.f32.mrb[0].mxu0
  %v569 = vadd.f32 0.0, %v568
  %v570 = vpop.f32.mrb[0].mxu0
  %571 = vmatprep.mubr.bf16.mxu0 0
  %572 = vmatmul.mubr.bf16.gmra.mrb[0].mxu0 %v340
  %v573 = vpop.f32.mrb[0].mxu0
  %v574 = vadd.f32 0.0, %v573
  %v575 = vpop.f32.mrb[0].mxu0
  %v576 = vpop.f32.mrb[0].mxu0
  %v577 = vadd.f32 0.0, %v576
  %v578 = vpop.f32.mrb[0].mxu0
  %579 = vmatprep.mubr.bf16.mxu0 0
  %580 = vmatmul.mubr.bf16.gmra.mrb[0].mxu0 %v343
  %v581 = vpop.f32.mrb[0].mxu0
  %v582 = vadd.f32 0.0, %v581
  %v583 = vpop.f32.mrb[0].mxu0
  %v584 = vpop.f32.mrb[0].mxu0
  %v585 = vadd.f32 0.0, %v584
  %v586 = vpop.f32.mrb[0].mxu0
  %587 = vmatprep.mubr.bf16.mxu0 0
  %588 = vmatmul.mubr.bf16.gmra.mrb[0].mxu0 %v346
  %v589 = vpop.f32.mrb[0].mxu0
  %v590 = vadd.f32 0.0, %v589
  %v591 = vpop.f32.mrb[0].mxu0
  %v592 = vpop.f32.mrb[0].mxu0
  %v593 = vadd.f32 0.0, %v592
  %v594 = vpop.f32.mrb[0].mxu0
  %595 = vmatprep.mubr.bf16.mxu0 0
  %596 = vmatmul.mubr.bf16.gmra.mrb[0].mxu0 %v349
  %v597 = vpop.f32.mrb[0].mxu0
  %v598 = vadd.f32 0.0, %v597
  %v599 = vpop.f32.mrb[0].mxu0
  %v600 = vpop.f32.mrb[0].mxu0
  %v601 = vadd.f32 0.0, %v600
  %v602 = vpop.f32.mrb[0].mxu0
  %603 = vmatprep.mubr.bf16.mxu0 0
  %604 = vmatmul.mubr.bf16.gmra.mrb[0].mxu0 %v352
  %v605 = vpop.f32.mrb[0].mxu0
  %v606 = vadd.f32 0.0, %v605
  %v607 = vpop.f32.mrb[0].mxu0
  %v608 = vpop.f32.mrb[0].mxu0
  %v609 = vadd.f32 0.0, %v608
  %v610 = vpop.f32.mrb[0].mxu0
  %611 = vmatprep.mubr.bf16.mxu0 0
  %612 = vmatmul.mubr.bf16.gmra.mrb[0].mxu0 %v355
  %v613 = vpop.f32.mrb[0].mxu0
  %v614 = vadd.f32 0.0, %v613
  %v615 = vpop.f32.mrb[0].mxu0
  %v616 = vpop.f32.mrb[0].mxu0
  %v617 = vadd.f32 0.0, %v616
  %v618 = vpop.f32.mrb[0].mxu0
  %619 = vmatprep.mubr.bf16.mxu0 0
  %620 = vmatmul.mubr.bf16.gmra.mrb[0].mxu0 %v358
  %v621 = vpop.f32.mrb[0].mxu0
  %v622 = vadd.f32 0.0, %v621
  %v623 = vpop.f32.mrb[0].mxu0
  %v624 = vpop.f32.mrb[0].mxu0
  %v625 = vadd.f32 0.0, %v624
  %v626 = vpop.f32.mrb[0].mxu0
  %627 = vmatprep.mubr.bf16.mxu0 0
  %628 = vmatmul.mubr.bf16.gmra.mrb[0].mxu0 %v361
  %v629 = vpop.f32.mrb[0].mxu0
  %v630 = vadd.f32 0.0, %v629
  %v631 = vpop.f32.mrb[0].mxu0
  %v632 = vpop.f32.mrb[0].mxu0
  %v633 = vadd.f32 0.0, %v632
  %v634 = vpop.f32.mrb[0].mxu0
  %635 = vmatprep.mubr.bf16.mxu0 0
  %636 = vmatmul.mubr.bf16.gmra.mrb[0].mxu0 %v364
  %v637 = vpop.f32.mrb[0].mxu0
  %v638 = vadd.f32 0.0, %v637
  %v639 = vpop.f32.mrb[0].mxu0
  %v640 = vpop.f32.mrb[0].mxu0
  %v641 = vadd.f32 0.0, %v640
  %v642 = vpop.f32.mrb[0].mxu0
  %643 = vmatprep.mubr.bf16.mxu0 0
  %644 = vmatmul.mubr.bf16.gmra.mrb[0].mxu0 %v367
  %v645 = vpop.f32.mrb[0].mxu0
  %v646 = vadd.f32 0.0, %v645
  %v647 = vpop.f32.mrb[0].mxu0
  %v648 = vpop.f32.mrb[0].mxu0
  %v649 = vadd.f32 0.0, %v648
  %v650 = vpop.f32.mrb[0].mxu0
  %651 = vmatprep.mubr.bf16.mxu0 0
  %652 = vmatmul.mubr.bf16.gmra.mrb[0].mxu0 %v370
  %v653 = vpop.f32.mrb[0].mxu0
  %v654 = vadd.f32 0.0, %v653
  %v655 = vpop.f32.mrb[0].mxu0
  %v656 = vpop.f32.mrb[0].mxu0
  %v657 = vadd.f32 0.0, %v656
  %v658 = vpop.f32.mrb[0].mxu0
  %659 = vmatprep.mubr.bf16.mxu0 0
  %660 = vmatmul.mubr.bf16.gmra.mrb[0].mxu0 %v373
  %v661 = vpop.f32.mrb[0].mxu0
  %v662 = vadd.f32 0.0, %v661
  %v663 = vpop.f32.mrb[0].mxu0
  %v664 = vpop.f32.mrb[0].mxu0
  %v665 = vadd.f32 0.0, %v664
  %v666 = vpop.f32.mrb[0].mxu0
  %667 = vdwg.mxu0
  %vm668 = vcmask 523264
  %v669 = vsel %vm668, %v414, 0.0
  %v670 = vsel %vm668, %v417, 0.0
  %v671 = vadd.f32 %v669, %v670
  %v672 = vsel %vm668, %v422, 0.0
  %v673 = vadd.f32 %v671, %v672
  %v674 = vsel %vm668, %v425, 0.0
  %v675 = vadd.f32 %v673, %v674
  %v676 = vsel %vm668, %v430, 0.0
  %v677 = vadd.f32 %v675, %v676
  %v678 = vsel %vm668, %v433, 0.0
  %v679 = vadd.f32 %v677, %v678
  %v680 = vsel %vm668, %v438, 0.0
  %v681 = vadd.f32 %v679, %v680
  %v682 = vsel %vm668, %v441, 0.0
  %v683 = vadd.f32 %v681, %v682
  %v684 = vsel %vm668, %v446, 0.0
  %v685 = vadd.f32 %v683, %v684
  %v686 = vsel %vm668, %v449, 0.0
  %v687 = vadd.f32 %v685, %v686
  %v688 = vsel %vm668, %v454, 0.0
  %v689 = vadd.f32 %v687, %v688
  %v690 = vsel %vm668, %v457, 0.0
  %v691 = vadd.f32 %v689, %v690
  %v692 = vsel %vm668, %v462, 0.0
  %v693 = vadd.f32 %v691, %v692
  %v694 = vsel %vm668, %v465, 0.0
  %v695 = vadd.f32 %v693, %v694
  %v696 = vsel %vm668, %v470, 0.0
  %v697 = vadd.f32 %v695, %v696
  %v698 = vsel %vm668, %v473, 0.0
  %v699 = vadd.f32 %v697, %v698
  %v700 = vsel %vm668, %v478, 0.0
  %v701 = vadd.f32 %v699, %v700
  %v702 = vsel %vm668, %v481, 0.0
  %v703 = vadd.f32 %v701, %v702
  %v704 = vsel %vm668, %v486, 0.0
  %v705 = vadd.f32 %v703, %v704
  %v706 = vsel %vm668, %v489, 0.0
  %v707 = vadd.f32 %v705, %v706
  %v708 = vsel %vm668, %v494, 0.0
  %v709 = vadd.f32 %v707, %v708
  %v710 = vsel %vm668, %v497, 0.0
  %v711 = vadd.f32 %v709, %v710
  %v712 = vsel %vm668, %v502, 0.0
  %v713 = vadd.f32 %v711, %v712
  %v714 = vsel %vm668, %v505, 0.0
  %v715 = vadd.f32 %v713, %v714
  %v716 = vsel %vm668, %v510, 0.0
  %v717 = vadd.f32 %v715, %v716
  %v718 = vsel %vm668, %v513, 0.0
  %v719 = vadd.f32 %v717, %v718
  %v720 = vsel %vm668, %v518, 0.0
  %v721 = vadd.f32 %v719, %v720
  %v722 = vsel %vm668, %v521, 0.0
  %v723 = vadd.f32 %v721, %v722
  %v724 = vsel %vm668, %v526, 0.0
  %v725 = vadd.f32 %v723, %v724
  %v726 = vsel %vm668, %v529, 0.0
  %v727 = vadd.f32 %v725, %v726
  %v728 = vsel %vm668, %v534, 0.0
  %v729 = vadd.f32 %v727, %v728
  %v730 = vsel %vm668, %v537, 0.0
  %v731 = vadd.f32 %v729, %v730
  %v732 = vsel %vm668, %v542, 0.0
  %v733 = vadd.f32 %v731, %v732
  %v734 = vsel %vm668, %v545, 0.0
  %v735 = vadd.f32 %v733, %v734
  %v736 = vsel %vm668, %v550, 0.0
  %v737 = vadd.f32 %v735, %v736
  %v738 = vsel %vm668, %v553, 0.0
  %v739 = vadd.f32 %v737, %v738
  %v740 = vsel %vm668, %v558, 0.0
  %v741 = vadd.f32 %v739, %v740
  %v742 = vsel %vm668, %v561, 0.0
  %v743 = vadd.f32 %v741, %v742
  %v744 = vsel %vm668, %v566, 0.0
  %v745 = vadd.f32 %v743, %v744
  %v746 = vsel %vm668, %v569, 0.0
  %v747 = vadd.f32 %v745, %v746
  %v748 = vsel %vm668, %v574, 0.0
  %v749 = vadd.f32 %v747, %v748
  %v750 = vsel %vm668, %v577, 0.0
  %v751 = vadd.f32 %v749, %v750
  %v752 = vsel %vm668, %v582, 0.0
  %v753 = vadd.f32 %v751, %v752
  %v754 = vsel %vm668, %v585, 0.0
  %v755 = vadd.f32 %v753, %v754
  %v756 = vsel %vm668, %v590, 0.0
  %v757 = vadd.f32 %v755, %v756
  %v758 = vsel %vm668, %v593, 0.0
  %v759 = vadd.f32 %v757, %v758
  %v760 = vsel %vm668, %v598, 0.0
  %v761 = vadd.f32 %v759, %v760
  %v762 = vsel %vm668, %v601, 0.0
  %v763 = vadd.f32 %v761, %v762
  %v764 = vsel %vm668, %v606, 0.0
  %v765 = vadd.f32 %v763, %v764
  %v766 = vsel %vm668, %v609, 0.0
  %v767 = vadd.f32 %v765, %v766
  %v768 = vsel %vm668, %v614, 0.0
  %v769 = vadd.f32 %v767, %v768
  %v770 = vsel %vm668, %v617, 0.0
  %v771 = vadd.f32 %v769, %v770
  %v772 = vsel %vm668, %v622, 0.0
  %v773 = vadd.f32 %v771, %v772
  %v774 = vsel %vm668, %v625, 0.0
  %v775 = vadd.f32 %v773, %v774
  %v776 = vsel %vm668, %v630, 0.0
  %v777 = vadd.f32 %v775, %v776
  %v778 = vsel %vm668, %v633, 0.0
  %v779 = vadd.f32 %v777, %v778
  %v780 = vsel %vm668, %v638, 0.0
  %v781 = vadd.f32 %v779, %v780
  %v782 = vsel %vm668, %v641, 0.0
  %v783 = vadd.f32 %v781, %v782
  %v784 = vsel %vm668, %v646, 0.0
  %v785 = vadd.f32 %v783, %v784
  %v786 = vsel %vm668, %v649, 0.0
  %v787 = vadd.f32 %v785, %v786
  %v788 = vsel %vm668, %v654, 0.0
  %v789 = vadd.f32 %v787, %v788
  %v790 = vsel %vm668, %v657, 0.0
  %v791 = vadd.f32 %v789, %v790
  %v792 = vsel %vm668, %v662, 0.0
  %v793 = vadd.f32 %v791, %v792
  %v794 = vsel %vm668, %v665, 0.0
  %v795 = vadd.f32 %v793, %v794
  %v796 = vrot.slane %v795, 4
  %v797 = vadd.f32 %v795, %v796
  %v798 = vrot.slane %v797, 2
  %v799 = vadd.f32 %v797, %v798
  %v800 = vrot.slane %v799, 1
  %v801 = vadd.f32 %v799, %v800
  %v802 = vrcp.pop 512.0
  %v803 = vmul.f32 %v801, %v802
  %v804 = vsub.f32 %v414, %v803
  %v805 = vsub.f32 %v417, %v803
  %v806 = vsub.f32 %v422, %v803
  %v807 = vsub.f32 %v425, %v803
  %v808 = vsub.f32 %v430, %v803
  %v809 = vsub.f32 %v433, %v803
  %v810 = vsub.f32 %v438, %v803
  %v811 = vsub.f32 %v441, %v803
  %v812 = vsub.f32 %v446, %v803
  %v813 = vsub.f32 %v449, %v803
  %v814 = vsub.f32 %v454, %v803
  %v815 = vsub.f32 %v457, %v803
  %v816 = vsub.f32 %v462, %v803
  %v817 = vsub.f32 %v465, %v803
  %v818 = vsub.f32 %v470, %v803
  %v819 = vsub.f32 %v473, %v803
  %v820 = vsub.f32 %v478, %v803
  %v821 = vsub.f32 %v481, %v803
  %v822 = vsub.f32 %v486, %v803
  %v823 = vsub.f32 %v489, %v803
  %v824 = vsub.f32 %v494, %v803
  %v825 = vsub.f32 %v497, %v803
  %v826 = vsub.f32 %v502, %v803
  %v827 = vsub.f32 %v505, %v803
  %v828 = vsub.f32 %v510, %v803
  %v829 = vsub.f32 %v513, %v803
  %v830 = vsub.f32 %v518, %v803
  %v831 = vsub.f32 %v521, %v803
  %v832 = vsub.f32 %v526, %v803
  %v833 = vsub.f32 %v529, %v803
  %v834 = vsub.f32 %v534, %v803
  %v835 = vsub.f32 %v537, %v803
  %v836 = vsub.f32 %v542, %v803
  %v837 = vsub.f32 %v545, %v803
  %v838 = vsub.f32 %v550, %v803
  %v839 = vsub.f32 %v553, %v803
  %v840 = vsub.f32 %v558, %v803
  %v841 = vsub.f32 %v561, %v803
  %v842 = vsub.f32 %v566, %v803
  %v843 = vsub.f32 %v569, %v803
  %v844 = vsub.f32 %v574, %v803
  %v845 = vsub.f32 %v577, %v803
  %v846 = vsub.f32 %v582, %v803
  %v847 = vsub.f32 %v585, %v803
  %v848 = vsub.f32 %v590, %v803
  %v849 = vsub.f32 %v593, %v803
  %v850 = vsub.f32 %v598, %v803
  %v851 = vsub.f32 %v601, %v803
  %v852 = vsub.f32 %v606, %v803
  %v853 = vsub.f32 %v609, %v803
  %v854 = vsub.f32 %v614, %v803
  %v855 = vsub.f32 %v617, %v803
  %v856 = vsub.f32 %v622, %v803
  %v857 = vsub.f32 %v625, %v803
  %v858 = vsub.f32 %v630, %v803
  %v859 = vsub.f32 %v633, %v803
  %v860 = vsub.f32 %v638, %v803
  %v861 = vsub.f32 %v641, %v803
  %v862 = vsub.f32 %v646, %v803
  %v863 = vsub.f32 %v649, %v803
  %v864 = vsub.f32 %v654, %v803
  %v865 = vsub.f32 %v657, %v803
  %v866 = vsub.f32 %v662, %v803
  %v867 = vsub.f32 %v665, %v803
  %v868 = vmul.f32 %v804, %v804
  %v869 = vmul.f32 %v805, %v805
  %v870 = vmul.f32 %v806, %v806
  %v871 = vmul.f32 %v807, %v807
  %v872 = vmul.f32 %v808, %v808
  %v873 = vmul.f32 %v809, %v809
  %v874 = vmul.f32 %v810, %v810
  %v875 = vmul.f32 %v811, %v811
  %v876 = vmul.f32 %v812, %v812
  %v877 = vmul.f32 %v813, %v813
  %v878 = vmul.f32 %v814, %v814
  %v879 = vmul.f32 %v815, %v815
  %v880 = vmul.f32 %v816, %v816
  %v881 = vmul.f32 %v817, %v817
  %v882 = vmul.f32 %v818, %v818
  %v883 = vmul.f32 %v819, %v819
  %v884 = vmul.f32 %v820, %v820
  %v885 = vmul.f32 %v821, %v821
  %v886 = vmul.f32 %v822, %v822
  %v887 = vmul.f32 %v823, %v823
  %v888 = vmul.f32 %v824, %v824
  %v889 = vmul.f32 %v825, %v825
  %v890 = vmul.f32 %v826, %v826
  %v891 = vmul.f32 %v827, %v827
  %v892 = vmul.f32 %v828, %v828
  %v893 = vmul.f32 %v829, %v829
  %v894 = vmul.f32 %v830, %v830
  %v895 = vmul.f32 %v831, %v831
  %v896 = vmul.f32 %v832, %v832
  %v897 = vmul.f32 %v833, %v833
  %v898 = vmul.f32 %v834, %v834
  %v899 = vmul.f32 %v835, %v835
  %v900 = vmul.f32 %v836, %v836
  %v901 = vmul.f32 %v837, %v837
  %v902 = vmul.f32 %v838, %v838
  %v903 = vmul.f32 %v839, %v839
  %v904 = vmul.f32 %v840, %v840
  %v905 = vmul.f32 %v841, %v841
  %v906 = vmul.f32 %v842, %v842
  %v907 = vmul.f32 %v843, %v843
  %v908 = vmul.f32 %v844, %v844
  %v909 = vmul.f32 %v845, %v845
  %v910 = vmul.f32 %v846, %v846
  %v911 = vmul.f32 %v847, %v847
  %v912 = vmul.f32 %v848, %v848
  %v913 = vmul.f32 %v849, %v849
  %v914 = vmul.f32 %v850, %v850
  %v915 = vmul.f32 %v851, %v851
  %v916 = vmul.f32 %v852, %v852
  %v917 = vmul.f32 %v853, %v853
  %v918 = vmul.f32 %v854, %v854
  %v919 = vmul.f32 %v855, %v855
  %v920 = vmul.f32 %v856, %v856
  %v921 = vmul.f32 %v857, %v857
  %v922 = vmul.f32 %v858, %v858
  %v923 = vmul.f32 %v859, %v859
  %v924 = vmul.f32 %v860, %v860
  %v925 = vmul.f32 %v861, %v861
  %v926 = vmul.f32 %v862, %v862
  %v927 = vmul.f32 %v863, %v863
  %v928 = vmul.f32 %v864, %v864
  %v929 = vmul.f32 %v865, %v865
  %v930 = vmul.f32 %v866, %v866
  %v931 = vmul.f32 %v867, %v867
  %v932 = vsel %vm668, %v868, 0.0
  %v933 = vsel %vm668, %v869, 0.0
  %v934 = vadd.f32 %v932, %v933
  %v935 = vsel %vm668, %v870, 0.0
  %v936 = vadd.f32 %v934, %v935
  %v937 = vsel %vm668, %v871, 0.0
  %v938 = vadd.f32 %v936, %v937
  %v939 = vsel %vm668, %v872, 0.0
  %v940 = vadd.f32 %v938, %v939
  %v941 = vsel %vm668, %v873, 0.0
  %v942 = vadd.f32 %v940, %v941
  %v943 = vsel %vm668, %v874, 0.0
  %v944 = vadd.f32 %v942, %v943
  %v945 = vsel %vm668, %v875, 0.0
  %v946 = vadd.f32 %v944, %v945
  %v947 = vsel %vm668, %v876, 0.0
  %v948 = vadd.f32 %v946, %v947
  %v949 = vsel %vm668, %v877, 0.0
  %v950 = vadd.f32 %v948, %v949
  %v951 = vsel %vm668, %v878, 0.0
  %v952 = vadd.f32 %v950, %v951
  %v953 = vsel %vm668, %v879, 0.0
  %v954 = vadd.f32 %v952, %v953
  %v955 = vsel %vm668, %v880, 0.0
  %v956 = vadd.f32 %v954, %v955
  %v957 = vsel %vm668, %v881, 0.0
  %v958 = vadd.f32 %v956, %v957
  %v959 = vsel %vm668, %v882, 0.0
  %v960 = vadd.f32 %v958, %v959
  %v961 = vsel %vm668, %v883, 0.0
  %v962 = vadd.f32 %v960, %v961
  %v963 = vsel %vm668, %v884, 0.0
  %v964 = vadd.f32 %v962, %v963
  %v965 = vsel %vm668, %v885, 0.0
  %v966 = vadd.f32 %v964, %v965
  %v967 = vsel %vm668, %v886, 0.0
  %v968 = vadd.f32 %v966, %v967
  %v969 = vsel %vm668, %v887, 0.0
  %v970 = vadd.f32 %v968, %v969
  %v971 = vsel %vm668, %v888, 0.0
  %v972 = vadd.f32 %v970, %v971
  %v973 = vsel %vm668, %v889, 0.0
  %v974 = vadd.f32 %v972, %v973
  %v975 = vsel %vm668, %v890, 0.0
  %v976 = vadd.f32 %v974, %v975
  %v977 = vsel %vm668, %v891, 0.0
  %v978 = vadd.f32 %v976, %v977
  %v979 = vsel %vm668, %v892, 0.0
  %v980 = vadd.f32 %v978, %v979
  %v981 = vsel %vm668, %v893, 0.0
  %v982 = vadd.f32 %v980, %v981
  %v983 = vsel %vm668, %v894, 0.0
  %v984 = vadd.f32 %v982, %v983
  %v985 = vsel %vm668, %v895, 0.0
  %v986 = vadd.f32 %v984, %v985
  %v987 = vsel %vm668, %v896, 0.0
  %v988 = vadd.f32 %v986, %v987
  %v989 = vsel %vm668, %v897, 0.0
  %v990 = vadd.f32 %v988, %v989
  %v991 = vsel %vm668, %v898, 0.0
  %v992 = vadd.f32 %v990, %v991
  %v993 = vsel %vm668, %v899, 0.0
  %v994 = vadd.f32 %v992, %v993
  %v995 = vsel %vm668, %v900, 0.0
  %v996 = vadd.f32 %v994, %v995
  %v997 = vsel %vm668, %v901, 0.0
  %v998 = vadd.f32 %v996, %v997
  %v999 = vsel %vm668, %v902, 0.0
  %v1000 = vadd.f32 %v998, %v999
  %v1001 = vsel %vm668, %v903, 0.0
  %v1002 = vadd.f32 %v1000, %v1001
  %v1003 = vsel %vm668, %v904, 0.0
  %v1004 = vadd.f32 %v1002, %v1003
  %v1005 = vsel %vm668, %v905, 0.0
  %v1006 = vadd.f32 %v1004, %v1005
  %v1007 = vsel %vm668, %v906, 0.0
  %v1008 = vadd.f32 %v1006, %v1007
  %v1009 = vsel %vm668, %v907, 0.0
  %v1010 = vadd.f32 %v1008, %v1009
  %v1011 = vsel %vm668, %v908, 0.0
  %v1012 = vadd.f32 %v1010, %v1011
  %v1013 = vsel %vm668, %v909, 0.0
  %v1014 = vadd.f32 %v1012, %v1013
  %v1015 = vsel %vm668, %v910, 0.0
  %v1016 = vadd.f32 %v1014, %v1015
  %v1017 = vsel %vm668, %v911, 0.0
  %v1018 = vadd.f32 %v1016, %v1017
  %v1019 = vsel %vm668, %v912, 0.0
  %v1020 = vadd.f32 %v1018, %v1019
  %v1021 = vsel %vm668, %v913, 0.0
  %v1022 = vadd.f32 %v1020, %v1021
  %v1023 = vsel %vm668, %v914, 0.0
  %v1024 = vadd.f32 %v1022, %v1023
  %v1025 = vsel %vm668, %v915, 0.0
  %v1026 = vadd.f32 %v1024, %v1025
  %v1027 = vsel %vm668, %v916, 0.0
  %v1028 = vadd.f32 %v1026, %v1027
  %v1029 = vsel %vm668, %v917, 0.0
  %v1030 = vadd.f32 %v1028, %v1029
  %v1031 = vsel %vm668, %v918, 0.0
  %v1032 = vadd.f32 %v1030, %v1031
  %v1033 = vsel %vm668, %v919, 0.0
  %v1034 = vadd.f32 %v1032, %v1033
  %v1035 = vsel %vm668, %v920, 0.0
  %v1036 = vadd.f32 %v1034, %v1035
  %v1037 = vsel %vm668, %v921, 0.0
  %v1038 = vadd.f32 %v1036, %v1037
  %v1039 = vsel %vm668, %v922, 0.0
  %v1040 = vadd.f32 %v1038, %v1039
  %v1041 = vsel %vm668, %v923, 0.0
  %v1042 = vadd.f32 %v1040, %v1041
  %v1043 = vsel %vm668, %v924, 0.0
  %v1044 = vadd.f32 %v1042, %v1043
  %v1045 = vsel %vm668, %v925, 0.0
  %v1046 = vadd.f32 %v1044, %v1045
  %v1047 = vsel %vm668, %v926, 0.0
  %v1048 = vadd.f32 %v1046, %v1047
  %v1049 = vsel %vm668, %v927, 0.0
  %v1050 = vadd.f32 %v1048, %v1049
  %v1051 = vsel %vm668, %v928, 0.0
  %v1052 = vadd.f32 %v1050, %v1051
  %v1053 = vsel %vm668, %v929, 0.0
  %v1054 = vadd.f32 %v1052, %v1053
  %v1055 = vsel %vm668, %v930, 0.0
  %v1056 = vadd.f32 %v1054, %v1055
  %v1057 = vsel %vm668, %v931, 0.0
  %v1058 = vadd.f32 %v1056, %v1057
  %v1059 = vrot.slane %v1058, 4
  %v1060 = vadd.f32 %v1058, %v1059
  %v1061 = vrot.slane %v1060, 2
  %v1062 = vadd.f32 %v1060, %v1061
  %v1063 = vrot.slane %v1062, 1
  %v1064 = vadd.f32 %v1062, %v1063
  %v1065 = vmul.f32 %v1064, %v802
  %v1066 = vadd.f32 %v1065, 1e-05
  %v1067 = vrsqrt.pop %v1066
  %v1068 = vmul.f32 %v804, %v1067
  %v1069 = vmul.f32 %v805, %v1067
  %v1070 = vmul.f32 %v806, %v1067
  %v1071 = vmul.f32 %v807, %v1067
  %v1072 = vmul.f32 %v808, %v1067
  %v1073 = vmul.f32 %v809, %v1067
  %v1074 = vmul.f32 %v810, %v1067
  %v1075 = vmul.f32 %v811, %v1067
  %v1076 = vmul.f32 %v812, %v1067
  %v1077 = vmul.f32 %v813, %v1067
  %v1078 = vmul.f32 %v814, %v1067
  %v1079 = vmul.f32 %v815, %v1067
  %v1080 = vmul.f32 %v816, %v1067
  %v1081 = vmul.f32 %v817, %v1067
  %v1082 = vmul.f32 %v818, %v1067
  %v1083 = vmul.f32 %v819, %v1067
  %v1084 = vmul.f32 %v820, %v1067
  %v1085 = vmul.f32 %v821, %v1067
  %v1086 = vmul.f32 %v822, %v1067
  %v1087 = vmul.f32 %v823, %v1067
  %v1088 = vmul.f32 %v824, %v1067
  %v1089 = vmul.f32 %v825, %v1067
  %v1090 = vmul.f32 %v826, %v1067
  %v1091 = vmul.f32 %v827, %v1067
  %v1092 = vmul.f32 %v828, %v1067
  %v1093 = vmul.f32 %v829, %v1067
  %v1094 = vmul.f32 %v830, %v1067
  %v1095 = vmul.f32 %v831, %v1067
  %v1096 = vmul.f32 %v832, %v1067
  %v1097 = vmul.f32 %v833, %v1067
  %v1098 = vmul.f32 %v834, %v1067
  %v1099 = vmul.f32 %v835, %v1067
  %v1100 = vmul.f32 %v836, %v1067
  %v1101 = vmul.f32 %v837, %v1067
  %v1102 = vmul.f32 %v838, %v1067
  %v1103 = vmul.f32 %v839, %v1067
  %v1104 = vmul.f32 %v840, %v1067
  %v1105 = vmul.f32 %v841, %v1067
  %v1106 = vmul.f32 %v842, %v1067
  %v1107 = vmul.f32 %v843, %v1067
  %v1108 = vmul.f32 %v844, %v1067
  %v1109 = vmul.f32 %v845, %v1067
  %v1110 = vmul.f32 %v846, %v1067
  %v1111 = vmul.f32 %v847, %v1067
  %v1112 = vmul.f32 %v848, %v1067
  %v1113 = vmul.f32 %v849, %v1067
  %v1114 = vmul.f32 %v850, %v1067
  %v1115 = vmul.f32 %v851, %v1067
  %v1116 = vmul.f32 %v852, %v1067
  %v1117 = vmul.f32 %v853, %v1067
  %v1118 = vmul.f32 %v854, %v1067
  %v1119 = vmul.f32 %v855, %v1067
  %v1120 = vmul.f32 %v856, %v1067
  %v1121 = vmul.f32 %v857, %v1067
  %v1122 = vmul.f32 %v858, %v1067
  %v1123 = vmul.f32 %v859, %v1067
  %v1124 = vmul.f32 %v860, %v1067
  %v1125 = vmul.f32 %v861, %v1067
  %v1126 = vmul.f32 %v862, %v1067
  %v1127 = vmul.f32 %v863, %v1067
  %v1128 = vmul.f32 %v864, %v1067
  %v1129 = vmul.f32 %v865, %v1067
  %v1130 = vmul.f32 %v866, %v1067
  %v1131 = vmul.f32 %v867, %v1067
  %v1132 = vld [vmem:[%s2] sm:$0x1]
  %v1134 = vlaneseq
  %v1135 = vshrl.u32 %v1134, 7
  %v1136 = vsub.s32 0, %v1135
  %v1137 = vrot.slane %v1132, %v1136
  %v1139 = vmul.f32 %v1068, %v1137
  %v1140 = vmul.f32 %v1069, %v1137
  %v1141 = vmul.f32 %v1070, %v1137
  %v1142 = vmul.f32 %v1071, %v1137
  %v1143 = vmul.f32 %v1072, %v1137
  %v1144 = vmul.f32 %v1073, %v1137
  %v1145 = vmul.f32 %v1074, %v1137
  %v1146 = vmul.f32 %v1075, %v1137
  %v1147 = vmul.f32 %v1076, %v1137
  %v1148 = vmul.f32 %v1077, %v1137
  %v1149 = vmul.f32 %v1078, %v1137
  %v1150 = vmul.f32 %v1079, %v1137
  %v1151 = vmul.f32 %v1080, %v1137
  %v1152 = vmul.f32 %v1081, %v1137
  %v1153 = vmul.f32 %v1082, %v1137
  %v1154 = vmul.f32 %v1083, %v1137
  %v1155 = vmul.f32 %v1084, %v1137
  %v1156 = vmul.f32 %v1085, %v1137
  %v1157 = vmul.f32 %v1086, %v1137
  %v1158 = vmul.f32 %v1087, %v1137
  %v1159 = vmul.f32 %v1088, %v1137
  %v1160 = vmul.f32 %v1089, %v1137
  %v1161 = vmul.f32 %v1090, %v1137
  %v1162 = vmul.f32 %v1091, %v1137
  %v1163 = vmul.f32 %v1092, %v1137
  %v1164 = vmul.f32 %v1093, %v1137
  %v1165 = vmul.f32 %v1094, %v1137
  %v1166 = vmul.f32 %v1095, %v1137
  %v1167 = vmul.f32 %v1096, %v1137
  %v1168 = vmul.f32 %v1097, %v1137
  %v1169 = vmul.f32 %v1098, %v1137
  %v1170 = vmul.f32 %v1099, %v1137
  %v1171 = vmul.f32 %v1100, %v1137
  %v1172 = vmul.f32 %v1101, %v1137
  %v1173 = vmul.f32 %v1102, %v1137
  %v1174 = vmul.f32 %v1103, %v1137
  %v1175 = vmul.f32 %v1104, %v1137
  %v1176 = vmul.f32 %v1105, %v1137
  %v1177 = vmul.f32 %v1106, %v1137
  %v1178 = vmul.f32 %v1107, %v1137
  %v1179 = vmul.f32 %v1108, %v1137
  %v1180 = vmul.f32 %v1109, %v1137
  %v1181 = vmul.f32 %v1110, %v1137
  %v1182 = vmul.f32 %v1111, %v1137
  %v1183 = vmul.f32 %v1112, %v1137
  %v1184 = vmul.f32 %v1113, %v1137
  %v1185 = vmul.f32 %v1114, %v1137
  %v1186 = vmul.f32 %v1115, %v1137
  %v1187 = vmul.f32 %v1116, %v1137
  %v1188 = vmul.f32 %v1117, %v1137
  %v1189 = vmul.f32 %v1118, %v1137
  %v1190 = vmul.f32 %v1119, %v1137
  %v1191 = vmul.f32 %v1120, %v1137
  %v1192 = vmul.f32 %v1121, %v1137
  %v1193 = vmul.f32 %v1122, %v1137
  %v1194 = vmul.f32 %v1123, %v1137
  %v1195 = vmul.f32 %v1124, %v1137
  %v1196 = vmul.f32 %v1125, %v1137
  %v1197 = vmul.f32 %v1126, %v1137
  %v1198 = vmul.f32 %v1127, %v1137
  %v1199 = vmul.f32 %v1128, %v1137
  %v1200 = vmul.f32 %v1129, %v1137
  %v1201 = vmul.f32 %v1130, %v1137
  %v1202 = vmul.f32 %v1131, %v1137
  %v1203 = vld [vmem:[%s3] sm:$0x1]
  %v1205 = vlaneseq
  %v1206 = vshrl.u32 %v1205, 7
  %v1207 = vsub.s32 0, %v1206
  %v1208 = vrot.slane %v1203, %v1207
  %v1210 = vadd.f32 %v1139, %v1208
  %v1211 = vadd.f32 %v1140, %v1208
  %v1212 = vadd.f32 %v1141, %v1208
  %v1213 = vadd.f32 %v1142, %v1208
  %v1214 = vadd.f32 %v1143, %v1208
  %v1215 = vadd.f32 %v1144, %v1208
  %v1216 = vadd.f32 %v1145, %v1208
  %v1217 = vadd.f32 %v1146, %v1208
  %v1218 = vadd.f32 %v1147, %v1208
  %v1219 = vadd.f32 %v1148, %v1208
  %v1220 = vadd.f32 %v1149, %v1208
  %v1221 = vadd.f32 %v1150, %v1208
  %v1222 = vadd.f32 %v1151, %v1208
  %v1223 = vadd.f32 %v1152, %v1208
  %v1224 = vadd.f32 %v1153, %v1208
  %v1225 = vadd.f32 %v1154, %v1208
  %v1226 = vadd.f32 %v1155, %v1208
  %v1227 = vadd.f32 %v1156, %v1208
  %v1228 = vadd.f32 %v1157, %v1208
  %v1229 = vadd.f32 %v1158, %v1208
  %v1230 = vadd.f32 %v1159, %v1208
  %v1231 = vadd.f32 %v1160, %v1208
  %v1232 = vadd.f32 %v1161, %v1208
  %v1233 = vadd.f32 %v1162, %v1208
  %v1234 = vadd.f32 %v1163, %v1208
  %v1235 = vadd.f32 %v1164, %v1208
  %v1236 = vadd.f32 %v1165, %v1208
  %v1237 = vadd.f32 %v1166, %v1208
  %v1238 = vadd.f32 %v1167, %v1208
  %v1239 = vadd.f32 %v1168, %v1208
  %v1240 = vadd.f32 %v1169, %v1208
  %v1241 = vadd.f32 %v1170, %v1208
  %v1242 = vadd.f32 %v1171, %v1208
  %v1243 = vadd.f32 %v1172, %v1208
  %v1244 = vadd.f32 %v1173, %v1208
  %v1245 = vadd.f32 %v1174, %v1208
  %v1246 = vadd.f32 %v1175, %v1208
  %v1247 = vadd.f32 %v1176, %v1208
  %v1248 = vadd.f32 %v1177, %v1208
  %v1249 = vadd.f32 %v1178, %v1208
  %v1250 = vadd.f32 %v1179, %v1208
  %v1251 = vadd.f32 %v1180, %v1208
  %v1252 = vadd.f32 %v1181, %v1208
  %v1253 = vadd.f32 %v1182, %v1208
  %v1254 = vadd.f32 %v1183, %v1208
  %v1255 = vadd.f32 %v1184, %v1208
  %v1256 = vadd.f32 %v1185, %v1208
  %v1257 = vadd.f32 %v1186, %v1208
  %v1258 = vadd.f32 %v1187, %v1208
  %v1259 = vadd.f32 %v1188, %v1208
  %v1260 = vadd.f32 %v1189, %v1208
  %v1261 = vadd.f32 %v1190, %v1208
  %v1262 = vadd.f32 %v1191, %v1208
  %v1263 = vadd.f32 %v1192, %v1208
  %v1264 = vadd.f32 %v1193, %v1208
  %v1265 = vadd.f32 %v1194, %v1208
  %v1266 = vadd.f32 %v1195, %v1208
  %v1267 = vadd.f32 %v1196, %v1208
  %v1268 = vadd.f32 %v1197, %v1208
  %v1269 = vadd.f32 %v1198, %v1208
  %v1270 = vadd.f32 %v1199, %v1208
  %v1271 = vadd.f32 %v1200, %v1208
  %v1272 = vadd.f32 %v1201, %v1208
  %v1273 = vadd.f32 %v1202, %v1208
  %v1274 = vmax.f32 %v1210, 0.0
  %v1275 = vmax.f32 %v1211, 0.0
  %v1276 = vmax.f32 %v1212, 0.0
  %v1277 = vmax.f32 %v1213, 0.0
  %v1278 = vmax.f32 %v1214, 0.0
  %v1279 = vmax.f32 %v1215, 0.0
  %v1280 = vmax.f32 %v1216, 0.0
  %v1281 = vmax.f32 %v1217, 0.0
  %v1282 = vmax.f32 %v1218, 0.0
  %v1283 = vmax.f32 %v1219, 0.0
  %v1284 = vmax.f32 %v1220, 0.0
  %v1285 = vmax.f32 %v1221, 0.0
  %v1286 = vmax.f32 %v1222, 0.0
  %v1287 = vmax.f32 %v1223, 0.0
  %v1288 = vmax.f32 %v1224, 0.0
  %v1289 = vmax.f32 %v1225, 0.0
  %v1290 = vmax.f32 %v1226, 0.0
  %v1291 = vmax.f32 %v1227, 0.0
  %v1292 = vmax.f32 %v1228, 0.0
  %v1293 = vmax.f32 %v1229, 0.0
  %v1294 = vmax.f32 %v1230, 0.0
  %v1295 = vmax.f32 %v1231, 0.0
  %v1296 = vmax.f32 %v1232, 0.0
  %v1297 = vmax.f32 %v1233, 0.0
  %v1298 = vmax.f32 %v1234, 0.0
  %v1299 = vmax.f32 %v1235, 0.0
  %v1300 = vmax.f32 %v1236, 0.0
  %v1301 = vmax.f32 %v1237, 0.0
  %v1302 = vmax.f32 %v1238, 0.0
  %v1303 = vmax.f32 %v1239, 0.0
  %v1304 = vmax.f32 %v1240, 0.0
  %v1305 = vmax.f32 %v1241, 0.0
  %v1306 = vmax.f32 %v1242, 0.0
  %v1307 = vmax.f32 %v1243, 0.0
  %v1308 = vmax.f32 %v1244, 0.0
  %v1309 = vmax.f32 %v1245, 0.0
  %v1310 = vmax.f32 %v1246, 0.0
  %v1311 = vmax.f32 %v1247, 0.0
  %v1312 = vmax.f32 %v1248, 0.0
  %v1313 = vmax.f32 %v1249, 0.0
  %v1314 = vmax.f32 %v1250, 0.0
  %v1315 = vmax.f32 %v1251, 0.0
  %v1316 = vmax.f32 %v1252, 0.0
  %v1317 = vmax.f32 %v1253, 0.0
  %v1318 = vmax.f32 %v1254, 0.0
  %v1319 = vmax.f32 %v1255, 0.0
  %v1320 = vmax.f32 %v1256, 0.0
  %v1321 = vmax.f32 %v1257, 0.0
  %v1322 = vmax.f32 %v1258, 0.0
  %v1323 = vmax.f32 %v1259, 0.0
  %v1324 = vmax.f32 %v1260, 0.0
  %v1325 = vmax.f32 %v1261, 0.0
  %v1326 = vmax.f32 %v1262, 0.0
  %v1327 = vmax.f32 %v1263, 0.0
  %v1328 = vmax.f32 %v1264, 0.0
  %v1329 = vmax.f32 %v1265, 0.0
  %v1330 = vmax.f32 %v1266, 0.0
  %v1331 = vmax.f32 %v1267, 0.0
  %v1332 = vmax.f32 %v1268, 0.0
  %v1333 = vmax.f32 %v1269, 0.0
  %v1334 = vmax.f32 %v1270, 0.0
  %v1335 = vmax.f32 %v1271, 0.0
  %v1336 = vmax.f32 %v1272, 0.0
  %v1337 = vmax.f32 %v1273, 0.0
  %v1338 = vpack.c.bf16 %v1275, %v1274
  %v1339 = vpack.c.bf16 %v1277, %v1276
  %v1340 = vpack.c.bf16 %v1279, %v1278
  %v1341 = vpack.c.bf16 %v1281, %v1280
  %v1342 = vpack.c.bf16 %v1283, %v1282
  %v1343 = vpack.c.bf16 %v1285, %v1284
  %v1344 = vpack.c.bf16 %v1287, %v1286
  %v1345 = vpack.c.bf16 %v1289, %v1288
  %v1346 = vpack.c.bf16 %v1291, %v1290
  %v1347 = vpack.c.bf16 %v1293, %v1292
  %v1348 = vpack.c.bf16 %v1295, %v1294
  %v1349 = vpack.c.bf16 %v1297, %v1296
  %v1350 = vpack.c.bf16 %v1299, %v1298
  %v1351 = vpack.c.bf16 %v1301, %v1300
  %v1352 = vpack.c.bf16 %v1303, %v1302
  %v1353 = vpack.c.bf16 %v1305, %v1304
  %v1354 = vpack.c.bf16 %v1307, %v1306
  %v1355 = vpack.c.bf16 %v1309, %v1308
  %v1356 = vpack.c.bf16 %v1311, %v1310
  %v1357 = vpack.c.bf16 %v1313, %v1312
  %v1358 = vpack.c.bf16 %v1315, %v1314
  %v1359 = vpack.c.bf16 %v1317, %v1316
  %v1360 = vpack.c.bf16 %v1319, %v1318
  %v1361 = vpack.c.bf16 %v1321, %v1320
  %v1362 = vpack.c.bf16 %v1323, %v1322
  %v1363 = vpack.c.bf16 %v1325, %v1324
  %v1364 = vpack.c.bf16 %v1327, %v1326
  %v1365 = vpack.c.bf16 %v1329, %v1328
  %v1366 = vpack.c.bf16 %v1331, %v1330
  %v1367 = vpack.c.bf16 %v1333, %v1332
  %v1368 = vpack.c.bf16 %v1335, %v1334
  %v1369 = vpack.c.bf16 %v1337, %v1336
  %v1402 = vunpack.c.l.b16 %v1338
  %v1403 = vunpack.c.h.b16 %v1338
  %v1404 = vunpack.c.l.b16 %v1339
  %v1405 = vunpack.c.h.b16 %v1339
  %v1406 = vunpack.c.l.b16 %v1340
  %v1407 = vunpack.c.h.b16 %v1340
  %v1408 = vunpack.c.l.b16 %v1341
  %v1409 = vunpack.c.h.b16 %v1341
  %v1410 = vunpack.c.l.b16 %v1342
  %v1411 = vunpack.c.h.b16 %v1342
  %v1412 = vunpack.c.l.b16 %v1343
  %v1413 = vunpack.c.h.b16 %v1343
  %v1414 = vunpack.c.l.b16 %v1344
  %v1415 = vunpack.c.h.b16 %v1344
  %v1416 = vunpack.c.l.b16 %v1345
  %v1417 = vunpack.c.h.b16 %v1345
  %v1418 = vunpack.c.l.b16 %v1346
  %v1419 = vunpack.c.h.b16 %v1346
  %v1420 = vunpack.c.l.b16 %v1347
  %v1421 = vunpack.c.h.b16 %v1347
  %v1422 = vunpack.c.l.b16 %v1348
  %v1423 = vunpack.c.h.b16 %v1348
  %v1424 = vunpack.c.l.b16 %v1349
  %v1425 = vunpack.c.h.b16 %v1349
  %v1426 = vunpack.c.l.b16 %v1350
  %v1427 = vunpack.c.h.b16 %v1350
  %v1428 = vunpack.c.l.b16 %v1351
  %v1429 = vunpack.c.h.b16 %v1351
  %v1430 = vunpack.c.l.b16 %v1352
  %v1431 = vunpack.c.h.b16 %v1352
  %v1432 = vunpack.c.l.b16 %v1353
  %v1433 = vunpack.c.h.b16 %v1353
  %v1434 = vunpack.c.l.b16 %v1354
  %v1435 = vunpack.c.h.b16 %v1354
  %v1436 = vunpack.c.l.b16 %v1355
  %v1437 = vunpack.c.h.b16 %v1355
  %v1438 = vunpack.c.l.b16 %v1356
  %v1439 = vunpack.c.h.b16 %v1356
  %v1440 = vunpack.c.l.b16 %v1357
  %v1441 = vunpack.c.h.b16 %v1357
  %v1442 = vunpack.c.l.b16 %v1358
  %v1443 = vunpack.c.h.b16 %v1358
  %v1444 = vunpack.c.l.b16 %v1359
  %v1445 = vunpack.c.h.b16 %v1359
  %v1446 = vunpack.c.l.b16 %v1360
  %v1447 = vunpack.c.h.b16 %v1360
  %v1448 = vunpack.c.l.b16 %v1361
  %v1449 = vunpack.c.h.b16 %v1361
  %v1450 = vunpack.c.l.b16 %v1362
  %v1451 = vunpack.c.h.b16 %v1362
  %v1452 = vunpack.c.l.b16 %v1363
  %v1453 = vunpack.c.h.b16 %v1363
  %v1454 = vunpack.c.l.b16 %v1364
  %v1455 = vunpack.c.h.b16 %v1364
  %v1456 = vunpack.c.l.b16 %v1365
  %v1457 = vunpack.c.h.b16 %v1365
  %v1458 = vunpack.c.l.b16 %v1366
  %v1459 = vunpack.c.h.b16 %v1366
  %v1460 = vunpack.c.l.b16 %v1367
  %v1461 = vunpack.c.h.b16 %v1367
  %v1462 = vunpack.c.l.b16 %v1368
  %v1463 = vunpack.c.h.b16 %v1368
  %v1464 = vunpack.c.l.b16 %v1369
  %v1465 = vunpack.c.h.b16 %v1369
  %v1466 = vpack.c.b16 %v1402, %v1402
  %v1467 = vpack.c.b16 %v1403, %v1403
  %v1468 = vpack.c.b16 %v1404, %v1404
  %v1469 = vpack.c.b16 %v1405, %v1405
  %v1470 = vpack.c.b16 %v1406, %v1406
  %v1471 = vpack.c.b16 %v1407, %v1407
  %v1472 = vpack.c.b16 %v1408, %v1408
  %v1473 = vpack.c.b16 %v1409, %v1409
  %v1474 = vpack.c.b16 %v1410, %v1410
  %v1475 = vpack.c.b16 %v1411, %v1411
  %v1476 = vpack.c.b16 %v1412, %v1412
  %v1477 = vpack.c.b16 %v1413, %v1413
  %v1478 = vpack.c.b16 %v1414, %v1414
  %v1479 = vpack.c.b16 %v1415, %v1415
  %v1480 = vpack.c.b16 %v1416, %v1416
  %v1481 = vpack.c.b16 %v1417, %v1417
  %v1482 = vpack.c.b16 %v1418, %v1418
  %v1483 = vpack.c.b16 %v1419, %v1419
  %v1484 = vpack.c.b16 %v1420, %v1420
  %v1485 = vpack.c.b16 %v1421, %v1421
  %v1486 = vpack.c.b16 %v1422, %v1422
  %v1487 = vpack.c.b16 %v1423, %v1423
  %v1488 = vpack.c.b16 %v1424, %v1424
  %v1489 = vpack.c.b16 %v1425, %v1425
  %v1490 = vpack.c.b16 %v1426, %v1426
  %v1491 = vpack.c.b16 %v1427, %v1427
  %v1492 = vpack.c.b16 %v1428, %v1428
  %v1493 = vpack.c.b16 %v1429, %v1429
  %v1494 = vpack.c.b16 %v1430, %v1430
  %v1495 = vpack.c.b16 %v1431, %v1431
  %v1496 = vpack.c.b16 %v1432, %v1432
  %v1497 = vpack.c.b16 %v1433, %v1433
  %v1498 = vpack.c.b16 %v1434, %v1434
  %v1499 = vpack.c.b16 %v1435, %v1435
  %v1500 = vpack.c.b16 %v1436, %v1436
  %v1501 = vpack.c.b16 %v1437, %v1437
  %v1502 = vpack.c.b16 %v1438, %v1438
  %v1503 = vpack.c.b16 %v1439, %v1439
  %v1504 = vpack.c.b16 %v1440, %v1440
  %v1505 = vpack.c.b16 %v1441, %v1441
  %v1506 = vpack.c.b16 %v1442, %v1442
  %v1507 = vpack.c.b16 %v1443, %v1443
  %v1508 = vpack.c.b16 %v1444, %v1444
  %v1509 = vpack.c.b16 %v1445, %v1445
  %v1510 = vpack.c.b16 %v1446, %v1446
  %v1511 = vpack.c.b16 %v1447, %v1447
  %v1512 = vpack.c.b16 %v1448, %v1448
  %v1513 = vpack.c.b16 %v1449, %v1449
  %v1514 = vpack.c.b16 %v1450, %v1450
  %v1515 = vpack.c.b16 %v1451, %v1451
  %v1516 = vpack.c.b16 %v1452, %v1452
  %v1517 = vpack.c.b16 %v1453, %v1453
  %v1518 = vpack.c.b16 %v1454, %v1454
  %v1519 = vpack.c.b16 %v1455, %v1455
  %v1520 = vpack.c.b16 %v1456, %v1456
  %v1521 = vpack.c.b16 %v1457, %v1457
  %v1522 = vpack.c.b16 %v1458, %v1458
  %v1523 = vpack.c.b16 %v1459, %v1459
  %v1524 = vpack.c.b16 %v1460, %v1460
  %v1525 = vpack.c.b16 %v1461, %v1461
  %v1526 = vpack.c.b16 %v1462, %v1462
  %v1527 = vpack.c.b16 %v1463, %v1463
  %v1528 = vpack.c.b16 %v1464, %v1464
  %v1529 = vpack.c.b16 %v1465, %v1465
  %vm1594 = vcmask 519168
  %1595 = vst.msk [vmem:[%s4] sm:$0xf] %vm1594, %v1466
  %1596 = vst.msk [vmem:[%s4 + $0x4] sm:$0xf] %vm1594, %v1467
  %1597 = vst.msk [vmem:[%s4 + $0x8] sm:$0xf] %vm1594, %v1468
  %1598 = vst.msk [vmem:[%s4 + $0xc] sm:$0xf] %vm1594, %v1469
  %1599 = vst.msk [vmem:[%s4 + $0x10] sm:$0xf] %vm1594, %v1470
  %1600 = vst.msk [vmem:[%s4 + $0x14] sm:$0xf] %vm1594, %v1471
  %1601 = vst.msk [vmem:[%s4 + $0x18] sm:$0xf] %vm1594, %v1472
  %1602 = vst.msk [vmem:[%s4 + $0x1c] sm:$0xf] %vm1594, %v1473
  %1603 = vst.msk [vmem:[%s4 + $0x20] sm:$0xf] %vm1594, %v1474
  %1604 = vst.msk [vmem:[%s4 + $0x24] sm:$0xf] %vm1594, %v1475
  %1605 = vst.msk [vmem:[%s4 + $0x28] sm:$0xf] %vm1594, %v1476
  %1606 = vst.msk [vmem:[%s4 + $0x2c] sm:$0xf] %vm1594, %v1477
  %1607 = vst.msk [vmem:[%s4 + $0x30] sm:$0xf] %vm1594, %v1478
  %1608 = vst.msk [vmem:[%s4 + $0x34] sm:$0xf] %vm1594, %v1479
  %1609 = vst.msk [vmem:[%s4 + $0x38] sm:$0xf] %vm1594, %v1480
  %1610 = vst.msk [vmem:[%s4 + $0x3c] sm:$0xf] %vm1594, %v1481
  %1611 = vst.msk [vmem:[%s4 + $0x40] sm:$0xf] %vm1594, %v1482
  %1612 = vst.msk [vmem:[%s4 + $0x44] sm:$0xf] %vm1594, %v1483
  %1613 = vst.msk [vmem:[%s4 + $0x48] sm:$0xf] %vm1594, %v1484
  %1614 = vst.msk [vmem:[%s4 + $0x4c] sm:$0xf] %vm1594, %v1485
  %1615 = vst.msk [vmem:[%s4 + $0x50] sm:$0xf] %vm1594, %v1486
  %1616 = vst.msk [vmem:[%s4 + $0x54] sm:$0xf] %vm1594, %v1487
  %1617 = vst.msk [vmem:[%s4 + $0x58] sm:$0xf] %vm1594, %v1488
  %1618 = vst.msk [vmem:[%s4 + $0x5c] sm:$0xf] %vm1594, %v1489
  %1619 = vst.msk [vmem:[%s4 + $0x60] sm:$0xf] %vm1594, %v1490
  %1620 = vst.msk [vmem:[%s4 + $0x64] sm:$0xf] %vm1594, %v1491
  %1621 = vst.msk [vmem:[%s4 + $0x68] sm:$0xf] %vm1594, %v1492
  %1622 = vst.msk [vmem:[%s4 + $0x6c] sm:$0xf] %vm1594, %v1493
  %1623 = vst.msk [vmem:[%s4 + $0x70] sm:$0xf] %vm1594, %v1494
  %1624 = vst.msk [vmem:[%s4 + $0x74] sm:$0xf] %vm1594, %v1495
  %1625 = vst.msk [vmem:[%s4 + $0x78] sm:$0xf] %vm1594, %v1496
  %1626 = vst.msk [vmem:[%s4 + $0x7c] sm:$0xf] %vm1594, %v1497
  %1627 = vst.msk [vmem:[%s4 + $0x80] sm:$0xf] %vm1594, %v1498
  %1628 = vst.msk [vmem:[%s4 + $0x84] sm:$0xf] %vm1594, %v1499
  %1629 = vst.msk [vmem:[%s4 + $0x88] sm:$0xf] %vm1594, %v1500
  %1630 = vst.msk [vmem:[%s4 + $0x8c] sm:$0xf] %vm1594, %v1501
  %1631 = vst.msk [vmem:[%s4 + $0x90] sm:$0xf] %vm1594, %v1502
  %1632 = vst.msk [vmem:[%s4 + $0x94] sm:$0xf] %vm1594, %v1503
  %1633 = vst.msk [vmem:[%s4 + $0x98] sm:$0xf] %vm1594, %v1504
  %1634 = vst.msk [vmem:[%s4 + $0x9c] sm:$0xf] %vm1594, %v1505
  %1635 = vst.msk [vmem:[%s4 + $0xa0] sm:$0xf] %vm1594, %v1506
  %1636 = vst.msk [vmem:[%s4 + $0xa4] sm:$0xf] %vm1594, %v1507
  %1637 = vst.msk [vmem:[%s4 + $0xa8] sm:$0xf] %vm1594, %v1508
  %1638 = vst.msk [vmem:[%s4 + $0xac] sm:$0xf] %vm1594, %v1509
  %1639 = vst.msk [vmem:[%s4 + $0xb0] sm:$0xf] %vm1594, %v1510
  %1640 = vst.msk [vmem:[%s4 + $0xb4] sm:$0xf] %vm1594, %v1511
  %1641 = vst.msk [vmem:[%s4 + $0xb8] sm:$0xf] %vm1594, %v1512
  %1642 = vst.msk [vmem:[%s4 + $0xbc] sm:$0xf] %vm1594, %v1513
  %1643 = vst.msk [vmem:[%s4 + $0xc0] sm:$0xf] %vm1594, %v1514
  %1644 = vst.msk [vmem:[%s4 + $0xc4] sm:$0xf] %vm1594, %v1515
  %1645 = vst.msk [vmem:[%s4 + $0xc8] sm:$0xf] %vm1594, %v1516
  %1646 = vst.msk [vmem:[%s4 + $0xcc] sm:$0xf] %vm1594, %v1517
  %1647 = vst.msk [vmem:[%s4 + $0xd0] sm:$0xf] %vm1594, %v1518
  %1648 = vst.msk [vmem:[%s4 + $0xd4] sm:$0xf] %vm1594, %v1519
  %1649 = vst.msk [vmem:[%s4 + $0xd8] sm:$0xf] %vm1594, %v1520
  %1650 = vst.msk [vmem:[%s4 + $0xdc] sm:$0xf] %vm1594, %v1521
  %1651 = vst.msk [vmem:[%s4 + $0xe0] sm:$0xf] %vm1594, %v1522
  %1652 = vst.msk [vmem:[%s4 + $0xe4] sm:$0xf] %vm1594, %v1523
  %1653 = vst.msk [vmem:[%s4 + $0xe8] sm:$0xf] %vm1594, %v1524
  %1654 = vst.msk [vmem:[%s4 + $0xec] sm:$0xf] %vm1594, %v1525
  %1655 = vst.msk [vmem:[%s4 + $0xf0] sm:$0xf] %vm1594, %v1526
  %1656 = vst.msk [vmem:[%s4 + $0xf4] sm:$0xf] %vm1594, %v1527
  %1657 = vst.msk [vmem:[%s4 + $0xf8] sm:$0xf] %vm1594, %v1528
  %1658 = vst.msk [vmem:[%s4 + $0xfc] sm:$0xf] %vm1594, %v1529
  // Predicated region
  $region18: #{tpu_custom_call.1} parent=0 // pred_check
    _
  $region19: #{tpu_custom_call.1} parent=0 // pred_check_branch
    %1660 = sbr.rel (0) target = $region21
  $region20: #{tpu_custom_call.1} parent=0 // pred_region
    _
  $region21: #{tpu_custom_call.1} parent=0 // pred_fallthru
    _
  // Predicated region
  $region22: #{tpu_custom_call.1} parent=0 // pred_check
    _
  $region23: #{tpu_custom_call.1} parent=0 // pred_check_branch
    %1662 = sbr.rel (0) target = $region25
  $region24: #{tpu_custom_call.1} parent=0 // pred_region
    _
  $region25: #{tpu_custom_call.1} parent=0 // pred_fallthru
    _

</llo_original>
